<compile_context>
chip_gen: v5e
topology: v5e:2x2
jax: 0.10.0
libtpu: 0.0.40
codegen_flags: <defaults>
</compile_context>

<pallas_src>
from functools import partial

import jax
import jax.numpy as jnp
from jax.experimental import pallas as pl
from jax.experimental.pallas import tpu as pltpu


# ---------------------------------------------------------------------------
# Pallas kernel: Wb windows per grid step
#   fused QK projection + V projection + per-head attention (windows batched)
#   + single full-width output projection.
# ---------------------------------------------------------------------------
def _window_attn_kernel(num_heads, head_dim, scale, wb, s_len, dim,
                        xqk_ref, xv_ref, pe_ref,
                        wqk_ref, bqk_ref, wv_ref, bv_ref, wp_ref, bp_ref,
                        o_ref):
    c_qk = xqk_ref.shape[-1]

    # In-kernel RPE add (broadcast over the Wb windows), then flatten windows
    # and tokens so the projections see an M = Wb*S row matmul.
    xqk = (xqk_ref[...] + pe_ref[...][None]).reshape(wb * s_len, c_qk)   # bf16
    xv = xv_ref[...].reshape(wb * s_len, dim)                            # bf16

    # Fused Q/K projection: (Wb*S, C_qk) @ (C_qk, 2C) -> lane-dense 2C output.
    qk = jnp.dot(xqk, wqk_ref[...],
                 preferred_element_type=jnp.float32) + bqk_ref[...]      # f32
    v = jnp.dot(xv, wv_ref[...],
                preferred_element_type=jnp.float32) + bv_ref[...]        # f32

    # Per-head attention, batched over the Wb windows (heads is a tiny static
    # unroll; all matmuls below carry the window batch dim).
    o_parts = []
    for h in range(num_heads):
        lo, hi = h * head_dim, (h + 1) * head_dim
        qh = qk[:, lo:hi].astype(jnp.bfloat16).reshape(wb, s_len, head_dim)
        kh = qk[:, dim + lo:dim + hi].astype(jnp.bfloat16).reshape(wb, s_len, head_dim)
        vh = v[:, lo:hi].astype(jnp.bfloat16).reshape(wb, s_len, head_dim)

        sc = jnp.einsum('wqd,wkd->wqk', qh, kh,
                        preferred_element_type=jnp.float32) * scale      # (Wb,S,S)
        sc = sc - jnp.max(sc, axis=-1, keepdims=True)
        e = jnp.exp(sc)
        inv_l = pl.reciprocal(jnp.sum(e, axis=-1, keepdims=True), approx=True)
        p = e * inv_l                                                    # softmax
        oh = jnp.einsum('wqk,wkd->wqd', p.astype(jnp.bfloat16), vh,
                        preferred_element_type=jnp.float32)              # (Wb,S,hd)
        o_parts.append(oh)

    # Assemble full-width head output and do one (Wb*S, C) @ (C, C) projection.
    o_cat = jnp.concatenate(o_parts, axis=-1)                            # (Wb,S,C) f32
    o_flat = o_cat.astype(jnp.bfloat16).reshape(wb * s_len, dim)
    out = jnp.dot(o_flat, wp_ref[...],
                  preferred_element_type=jnp.float32) + bp_ref[...]
    o_ref[...] = out.reshape(wb, s_len, dim).astype(o_ref.dtype)


# ---------------------------------------------------------------------------
# JAX glue
# ---------------------------------------------------------------------------
def linear_position_embedding_sine(coords, dim, normalize_factor=1.0 / 200.0):
    """coords: (..., 2) with last dim = [x, y]; returns (..., dim)."""
    freq = jnp.linspace(0.0, dim // 4 - 1, dim // 4)
    cx = coords[..., -2:-1]
    cy = coords[..., -1:]
    return jnp.concatenate([
        jnp.sin(3.14 * cx * freq * normalize_factor),
        jnp.cos(3.14 * cx * freq * normalize_factor),
        jnp.sin(3.14 * cy * freq * normalize_factor),
        jnp.cos(3.14 * cy * freq * normalize_factor),
    ], axis=-1)


def locally_grouped_attn_rpe_context(x, size, context, params,
                                     num_heads, ws, vert_c_dim, wb=16):
    B, N, C = x.shape
    H, W = size
    assert N == H * W and C % num_heads == 0 and ws != 1
    C_qk = C + vert_c_dim
    head_dim = C // num_heads
    scale = head_dim ** (-0.5)

    # ---- context: (B_ctx,128,H,W) -> repeat -> (B,HW,128) -> Linear(128,vc) ----
    ctx = jnp.tile(context, (B // context.shape[0], 1, 1, 1))
    ctx = ctx.reshape(B, -1, H * W).transpose(0, 2, 1)
    ctx = ctx @ params["w_ctx"] + params["b_ctx"]                    # (B,HW,vc)
    ctx = ctx.reshape(B, H, W, vert_c_dim)

    xh = x.reshape(B, H, W, C)
    x_qk = jnp.concatenate([xh, ctx], axis=-1)                       # (B,H,W,C_qk)

    # ---- pad to multiples of ws (reference does NOT mask padded tokens) ----
    pad_r = (ws - W % ws) % ws
    pad_b = (ws - H % ws) % ws
    xh = jnp.pad(xh, ((0, 0), (0, pad_b), (0, pad_r), (0, 0)))
    x_qk = jnp.pad(x_qk, ((0, 0), (0, pad_b), (0, pad_r), (0, 0)))
    Hp, Wp = H + pad_b, W + pad_r
    _h, _w = Hp // ws, Wp // ws

    # ---- window partition ----
    xh = xh.reshape(B, _h, ws, _w, ws, C).transpose(0, 1, 3, 2, 4, 5)
    x_qk = x_qk.reshape(B, _h, ws, _w, ws, C_qk).transpose(0, 1, 3, 2, 4, 5)

    # ---- sine RPE (same for every window), added inside the kernel ----
    ys, xs = jnp.meshgrid(jnp.arange(ws, dtype=jnp.float32),
                          jnp.arange(ws, dtype=jnp.float32), indexing="ij")
    coords = jnp.stack([xs, ys], axis=-1)                            # (ws,ws,2)
    pe = linear_position_embedding_sine(coords, C_qk)                # (ws,ws,C_qk)
    pe = pe.reshape(ws * ws, C_qk).astype(jnp.bfloat16)

    S = ws * ws
    NW = B * _h * _w
    xqk_win = x_qk.reshape(NW, S, C_qk).astype(jnp.bfloat16)
    xv_win = xh.reshape(NW, S, C).astype(jnp.bfloat16)

    # ---- batch Wb windows per grid step (pad window count if needed) ----
    Wb = max(1, min(wb, NW))
    NWp = ((NW + Wb - 1) // Wb) * Wb
    if NWp != NW:
        pad_w = NWp - NW
        xqk_win = jnp.pad(xqk_win, ((0, pad_w), (0, 0), (0, 0)))
        xv_win = jnp.pad(xv_win, ((0, pad_w), (0, 0), (0, 0)))

    # ---- bf16 weights (f32 accumulation in-kernel), fused QK weight ----
    w_qk = jnp.concatenate([params["wq"], params["wk"]], axis=1).astype(jnp.bfloat16)
    b_qk = jnp.concatenate([params["bq"], params["bk"]], axis=1).astype(jnp.float32)
    w_v = params["wv"].astype(jnp.bfloat16)
    b_v = params["bv"].astype(jnp.float32)
    w_p = params["wp"].astype(jnp.bfloat16)
    b_p = params["bp"].astype(jnp.float32)

    kernel = partial(_window_attn_kernel, num_heads, head_dim, scale, Wb, S, C)
    out = pl.pallas_call(
        kernel,
        out_shape=jax.ShapeDtypeStruct((NWp, S, C), jnp.float32),
        grid_spec=pltpu.PrefetchScalarGridSpec(
            num_scalar_prefetch=0,
            grid=(NWp // Wb,),
            in_specs=[
                pl.BlockSpec((Wb, S, C_qk), lambda i: (i, 0, 0)),
                pl.BlockSpec((Wb, S, C), lambda i: (i, 0, 0)),
                pl.BlockSpec((S, C_qk), lambda i: (0, 0)),       # RPE, resident
                pl.BlockSpec((C_qk, 2 * C), lambda i: (0, 0)),   # fused W_qk
                pl.BlockSpec((1, 2 * C), lambda i: (0, 0)),
                pl.BlockSpec((C, C), lambda i: (0, 0)),          # W_v
                pl.BlockSpec((1, C), lambda i: (0, 0)),
                pl.BlockSpec((C, C), lambda i: (0, 0)),          # W_proj
                pl.BlockSpec((1, C), lambda i: (0, 0)),
            ],
            out_specs=pl.BlockSpec((Wb, S, C), lambda i: (i, 0, 0)),
        ),
        compiler_params=pltpu.CompilerParams(
            dimension_semantics=("parallel",)),
    )(xqk_win, xv_win, pe, w_qk, b_qk, w_v, b_v, w_p, b_p)

    # ---- window merge + crop padding ----
    out = out[:NW].reshape(B, _h, _w, ws, ws, C).transpose(0, 1, 3, 2, 4, 5)
    out = out.reshape(B, Hp, Wp, C)[:, :H, :W, :].reshape(B, N, C)
    # attn_drop / proj_drop are identity (p=0.0 / eval mode) -> omitted.
    return out


def init_params(key, dim, vert_c_dim):
    C_qk = dim + vert_c_dim
    ks = jax.random.split(key, 10)

    def w(k, shape):
        return (0.02 * jax.random.normal(k, shape, jnp.float32)).astype(jnp.float32)

    return dict(
        w_ctx=w(ks[0], (128, vert_c_dim)), b_ctx=w(ks[1], (vert_c_dim,)),
        wq=w(ks[2], (C_qk, dim)), bq=w(ks[3], (1, dim)),
        wk=w(ks[4], (C_qk, dim)), bk=w(ks[5], (1, dim)),
        wv=w(ks[6], (dim, dim)), bv=w(ks[7], (1, dim)),
        wp=w(ks[8], (dim, dim)), bp=w(ks[9], (1, dim)),
    )


if __name__ == "__main__":
    key = jax.random.PRNGKey(0)
    k_x, k_ctx, k_p = jax.random.split(key, 3)

    B, H, W, C = 2, 8, 8, 64
    num_heads, ws, vert_c_dim = 2, 4, 32
    N = H * W

    x = jax.random.normal(k_x, (B, N, C), jnp.float32)
    context = jax.random.normal(k_ctx, (1, 128, H, W), jnp.float32)  # NCHW
    params = init_params(k_p, C, vert_c_dim)

    out = locally_grouped_attn_rpe_context(
        x, (H, W), context, params,
        num_heads=num_heads, ws=ws, vert_c_dim=vert_c_dim, wb=16)
    out = jax.block_until_ready(out)
    assert out.shape == (B, N, C)
    print("KERNEL_OK")
</pallas_src>

<mosaic_0001>
module attributes {stable_mosaic.version = 11 : i64} {
  func.func @_window_attn_kernel(%arg0: i32, %arg1: memref<8x16x96xbf16, #tpu.memory_space<vmem>>, %arg2: memref<8x16x64xbf16, #tpu.memory_space<vmem>>, %arg3: memref<16x96xbf16, #tpu.memory_space<vmem>>, %arg4: memref<96x128xbf16, #tpu.memory_space<vmem>>, %arg5: memref<1x128xf32, #tpu.memory_space<vmem>>, %arg6: memref<64x64xbf16, #tpu.memory_space<vmem>>, %arg7: memref<1x64xf32, #tpu.memory_space<vmem>>, %arg8: memref<64x64xbf16, #tpu.memory_space<vmem>>, %arg9: memref<1x64xf32, #tpu.memory_space<vmem>>, %arg10: memref<8x16x64xf32, #tpu.memory_space<vmem>>) attributes {dimension_semantics = [#tpu.dimension_semantics<parallel>], iteration_bounds = array<i64: 1>, scalar_prefetch = 0 : i64, scratch_operands = 0 : i64, tpu.core_type = #tpu.core_type<tc>, window_params = [{transform_indices = @transform_0, window_bounds = array<i64: 8, 16, 96>}, {transform_indices = @transform_1, window_bounds = array<i64: 8, 16, 64>}, {pipeline_mode = #tpu.pipeline_mode<synchronous>, transform_indices = @transform_2, window_bounds = array<i64: 16, 96>}, {pipeline_mode = #tpu.pipeline_mode<synchronous>, transform_indices = @transform_3, window_bounds = array<i64: 96, 128>}, {pipeline_mode = #tpu.pipeline_mode<synchronous>, transform_indices = @transform_4, window_bounds = array<i64: 1, 128>}, {pipeline_mode = #tpu.pipeline_mode<synchronous>, transform_indices = @transform_5, window_bounds = array<i64: 64, 64>}, {pipeline_mode = #tpu.pipeline_mode<synchronous>, transform_indices = @transform_6, window_bounds = array<i64: 1, 64>}, {pipeline_mode = #tpu.pipeline_mode<synchronous>, transform_indices = @transform_7, window_bounds = array<i64: 64, 64>}, {pipeline_mode = #tpu.pipeline_mode<synchronous>, transform_indices = @transform_8, window_bounds = array<i64: 1, 64>}, {transform_indices = @transform_9, window_bounds = array<i64: 8, 16, 64>}]} {
    %c0 = arith.constant 0 : index
    %c0_0 = arith.constant 0 : index
    %c0_1 = arith.constant 0 : index
    %0 = vector.load %arg1[%c0, %c0_0, %c0_1] : memref<8x16x96xbf16, #tpu.memory_space<vmem>>, vector<8x16x96xbf16>
    %c0_2 = arith.constant 0 : index
    %c0_3 = arith.constant 0 : index
    %1 = vector.load %arg3[%c0_2, %c0_3] : memref<16x96xbf16, #tpu.memory_space<vmem>>, vector<16x96xbf16>
    %2 = vector.shape_cast %1 : vector<16x96xbf16> to vector<1x16x96xbf16>
    %3 = vector.broadcast %2 : vector<1x16x96xbf16> to vector<8x16x96xbf16>
    %4 = arith.addf %0, %3 : vector<8x16x96xbf16>
    %5 = vector.shape_cast %4 : vector<8x16x96xbf16> to vector<128x96xbf16>
    %c0_4 = arith.constant 0 : index
    %c0_5 = arith.constant 0 : index
    %c0_6 = arith.constant 0 : index
    %6 = vector.load %arg2[%c0_4, %c0_5, %c0_6] : memref<8x16x64xbf16, #tpu.memory_space<vmem>>, vector<8x16x64xbf16>
    %7 = vector.shape_cast %6 : vector<8x16x64xbf16> to vector<128x64xbf16>
    %c0_7 = arith.constant 0 : index
    %c0_8 = arith.constant 0 : index
    %8 = vector.load %arg4[%c0_7, %c0_8] : memref<96x128xbf16, #tpu.memory_space<vmem>>, vector<96x128xbf16>
    %cst = arith.constant dense<0.000000e+00> : vector<128x128xf32>
    %9 = tpu.matmul %5, %8, %cst {dimension_numbers = #tpu.dot_dimension_numbers<[1], [0], [0], [1], [0, 0, 1, 1], [], []>} : vector<128x96xbf16>, vector<96x128xbf16>, vector<128x128xf32> -> vector<128x128xf32>
    %c0_9 = arith.constant 0 : index
    %c0_10 = arith.constant 0 : index
    %10 = vector.load %arg5[%c0_9, %c0_10] : memref<1x128xf32, #tpu.memory_space<vmem>>, vector<1x128xf32>
    %11 = vector.broadcast %10 : vector<1x128xf32> to vector<128x128xf32>
    %12 = arith.addf %9, %11 : vector<128x128xf32>
    %c0_11 = arith.constant 0 : index
    %c0_12 = arith.constant 0 : index
    %13 = vector.load %arg6[%c0_11, %c0_12] : memref<64x64xbf16, #tpu.memory_space<vmem>>, vector<64x64xbf16>
    %cst_13 = arith.constant dense<0.000000e+00> : vector<128x64xf32>
    %14 = tpu.matmul %7, %13, %cst_13 {dimension_numbers = #tpu.dot_dimension_numbers<[1], [0], [0], [1], [0, 0, 1, 1], [], []>} : vector<128x64xbf16>, vector<64x64xbf16>, vector<128x64xf32> -> vector<128x64xf32>
    %c0_14 = arith.constant 0 : index
    %c0_15 = arith.constant 0 : index
    %15 = vector.load %arg7[%c0_14, %c0_15] : memref<1x64xf32, #tpu.memory_space<vmem>>, vector<1x64xf32>
    %16 = vector.broadcast %15 : vector<1x64xf32> to vector<128x64xf32>
    %17 = arith.addf %14, %16 : vector<128x64xf32>
    %18 = vector.extract_strided_slice %12 {offsets = [0, 0], sizes = [128, 32], strides = [1, 1]} : vector<128x128xf32> to vector<128x32xf32>
    %19 = arith.truncf %18 : vector<128x32xf32> to vector<128x32xbf16>
    %20 = vector.shape_cast %19 : vector<128x32xbf16> to vector<8x16x32xbf16>
    %21 = vector.extract_strided_slice %12 {offsets = [0, 64], sizes = [128, 32], strides = [1, 1]} : vector<128x128xf32> to vector<128x32xf32>
    %22 = arith.truncf %21 : vector<128x32xf32> to vector<128x32xbf16>
    %23 = vector.shape_cast %22 : vector<128x32xbf16> to vector<8x16x32xbf16>
    %24 = vector.extract_strided_slice %17 {offsets = [0, 0], sizes = [128, 32], strides = [1, 1]} : vector<128x64xf32> to vector<128x32xf32>
    %25 = arith.truncf %24 : vector<128x32xf32> to vector<128x32xbf16>
    %26 = vector.shape_cast %25 : vector<128x32xbf16> to vector<8x16x32xbf16>
    "tpu.trace_start"() <{level = 10 : i32, message = "wqd,wkd->wqk"}> : () -> ()
    %cst_16 = arith.constant dense<0.000000e+00> : vector<8x16x16xf32>
    %27 = tpu.matmul %20, %23, %cst_16 {dimension_numbers = #tpu.dot_dimension_numbers<[2], [2], [1], [1], [0, 0, 0, 1, 1, 1], [0], [0]>} : vector<8x16x32xbf16>, vector<8x16x32xbf16>, vector<8x16x16xf32> -> vector<8x16x16xf32>
    "tpu.trace_stop"() : () -> ()
    %cst_17 = arith.constant 0.176776692 : f32
    %28 = vector.broadcast %cst_17 : f32 to vector<8x16x16xf32>
    %29 = arith.mulf %27, %28 : vector<8x16x16xf32>
    %cst_18 = arith.constant dense<0xFF800000> : vector<8x16xf32>
    %30 = vector.multi_reduction <maximumf>, %29, %cst_18 [2] : vector<8x16x16xf32> to vector<8x16xf32>
    %31 = vector.shape_cast %30 : vector<8x16xf32> to vector<8x16x1xf32>
    %32 = vector.broadcast %31 : vector<8x16x1xf32> to vector<8x16x16xf32>
    %33 = arith.subf %29, %32 : vector<8x16x16xf32>
    %34 = math.exp %33 : vector<8x16x16xf32>
    %cst_19 = arith.constant dense<0.000000e+00> : vector<8x16xf32>
    %35 = vector.multi_reduction <add>, %34, %cst_19 [2] : vector<8x16x16xf32> to vector<8x16xf32>
    %36 = vector.shape_cast %35 : vector<8x16xf32> to vector<8x16x1xf32>
    %37 = tpu.reciprocal %36 {approx = true} : vector<8x16x1xf32> -> vector<8x16x1xf32>
    %38 = vector.broadcast %37 : vector<8x16x1xf32> to vector<8x16x16xf32>
    %39 = arith.mulf %34, %38 : vector<8x16x16xf32>
    %40 = arith.truncf %39 : vector<8x16x16xf32> to vector<8x16x16xbf16>
    "tpu.trace_start"() <{level = 10 : i32, message = "wqk,wkd->wqd"}> : () -> ()
    %cst_20 = arith.constant dense<0.000000e+00> : vector<8x16x32xf32>
    %41 = tpu.matmul %40, %26, %cst_20 {dimension_numbers = #tpu.dot_dimension_numbers<[2], [1], [1], [2], [0, 0, 0, 1, 1, 2], [0], [0]>} : vector<8x16x16xbf16>, vector<8x16x32xbf16>, vector<8x16x32xf32> -> vector<8x16x32xf32>
    "tpu.trace_stop"() : () -> ()
    %42 = vector.extract_strided_slice %12 {offsets = [0, 32], sizes = [128, 32], strides = [1, 1]} : vector<128x128xf32> to vector<128x32xf32>
    %43 = arith.truncf %42 : vector<128x32xf32> to vector<128x32xbf16>
    %44 = vector.shape_cast %43 : vector<128x32xbf16> to vector<8x16x32xbf16>
    %45 = vector.extract_strided_slice %12 {offsets = [0, 96], sizes = [128, 32], strides = [1, 1]} : vector<128x128xf32> to vector<128x32xf32>
    %46 = arith.truncf %45 : vector<128x32xf32> to vector<128x32xbf16>
    %47 = vector.shape_cast %46 : vector<128x32xbf16> to vector<8x16x32xbf16>
    %48 = vector.extract_strided_slice %17 {offsets = [0, 32], sizes = [128, 32], strides = [1, 1]} : vector<128x64xf32> to vector<128x32xf32>
    %49 = arith.truncf %48 : vector<128x32xf32> to vector<128x32xbf16>
    %50 = vector.shape_cast %49 : vector<128x32xbf16> to vector<8x16x32xbf16>
    "tpu.trace_start"() <{level = 10 : i32, message = "wqd,wkd->wqk"}> : () -> ()
    %cst_21 = arith.constant dense<0.000000e+00> : vector<8x16x16xf32>
    %51 = tpu.matmul %44, %47, %cst_21 {dimension_numbers = #tpu.dot_dimension_numbers<[2], [2], [1], [1], [0, 0, 0, 1, 1, 1], [0], [0]>} : vector<8x16x32xbf16>, vector<8x16x32xbf16>, vector<8x16x16xf32> -> vector<8x16x16xf32>
    "tpu.trace_stop"() : () -> ()
    %cst_22 = arith.constant 0.176776692 : f32
    %52 = vector.broadcast %cst_22 : f32 to vector<8x16x16xf32>
    %53 = arith.mulf %51, %52 : vector<8x16x16xf32>
    %cst_23 = arith.constant dense<0xFF800000> : vector<8x16xf32>
    %54 = vector.multi_reduction <maximumf>, %53, %cst_23 [2] : vector<8x16x16xf32> to vector<8x16xf32>
    %55 = vector.shape_cast %54 : vector<8x16xf32> to vector<8x16x1xf32>
    %56 = vector.broadcast %55 : vector<8x16x1xf32> to vector<8x16x16xf32>
    %57 = arith.subf %53, %56 : vector<8x16x16xf32>
    %58 = math.exp %57 : vector<8x16x16xf32>
    %cst_24 = arith.constant dense<0.000000e+00> : vector<8x16xf32>
    %59 = vector.multi_reduction <add>, %58, %cst_24 [2] : vector<8x16x16xf32> to vector<8x16xf32>
    %60 = vector.shape_cast %59 : vector<8x16xf32> to vector<8x16x1xf32>
    %61 = tpu.reciprocal %60 {approx = true} : vector<8x16x1xf32> -> vector<8x16x1xf32>
    %62 = vector.broadcast %61 : vector<8x16x1xf32> to vector<8x16x16xf32>
    %63 = arith.mulf %58, %62 : vector<8x16x16xf32>
    %64 = arith.truncf %63 : vector<8x16x16xf32> to vector<8x16x16xbf16>
    "tpu.trace_start"() <{level = 10 : i32, message = "wqk,wkd->wqd"}> : () -> ()
    %cst_25 = arith.constant dense<0.000000e+00> : vector<8x16x32xf32>
    %65 = tpu.matmul %64, %50, %cst_25 {dimension_numbers = #tpu.dot_dimension_numbers<[2], [1], [1], [2], [0, 0, 0, 1, 1, 2], [0], [0]>} : vector<8x16x16xbf16>, vector<8x16x32xbf16>, vector<8x16x32xf32> -> vector<8x16x32xf32>
    "tpu.trace_stop"() : () -> ()
    %66 = tpu.concatenate %41, %65 in 2 : vector<8x16x32xf32>, vector<8x16x32xf32> -> vector<8x16x64xf32>
    %67 = arith.truncf %66 : vector<8x16x64xf32> to vector<8x16x64xbf16>
    %68 = vector.shape_cast %67 : vector<8x16x64xbf16> to vector<128x64xbf16>
    %c0_26 = arith.constant 0 : index
    %c0_27 = arith.constant 0 : index
    %69 = vector.load %arg8[%c0_26, %c0_27] : memref<64x64xbf16, #tpu.memory_space<vmem>>, vector<64x64xbf16>
    %cst_28 = arith.constant dense<0.000000e+00> : vector<128x64xf32>
    %70 = tpu.matmul %68, %69, %cst_28 {dimension_numbers = #tpu.dot_dimension_numbers<[1], [0], [0], [1], [0, 0, 1, 1], [], []>} : vector<128x64xbf16>, vector<64x64xbf16>, vector<128x64xf32> -> vector<128x64xf32>
    %c0_29 = arith.constant 0 : index
    %c0_30 = arith.constant 0 : index
    %71 = vector.load %arg9[%c0_29, %c0_30] : memref<1x64xf32, #tpu.memory_space<vmem>>, vector<1x64xf32>
    %72 = vector.broadcast %71 : vector<1x64xf32> to vector<128x64xf32>
    %73 = arith.addf %70, %72 : vector<128x64xf32>
    %74 = vector.shape_cast %73 : vector<128x64xf32> to vector<8x16x64xf32>
    %c0_31 = arith.constant 0 : index
    %c0_32 = arith.constant 0 : index
    %c0_33 = arith.constant 0 : index
    %75 = vector.load %arg10[%c0_31, %c0_32, %c0_33] : memref<8x16x64xf32, #tpu.memory_space<vmem>>, vector<8x16x64xf32>
    tpu.vector_store %arg10[%c0_31, %c0_32, %c0_33], %74 {strides = array<i32>} : memref<8x16x64xf32, #tpu.memory_space<vmem>>, vector<8x16x64xf32>,
    return
  }
  func.func @transform_0(%arg0: i32) -> (i32, i32, i32) {
    %c0_i32 = arith.constant 0 : i32
    %c0_i32_0 = arith.constant 0 : i32
    %c0_i32_1 = arith.constant 0 : i32
    return %arg0, %c0_i32, %c0_i32_0 : i32, i32, i32
  }
  func.func @transform_1(%arg0: i32) -> (i32, i32, i32) {
    %c0_i32 = arith.constant 0 : i32
    %c0_i32_0 = arith.constant 0 : i32
    %c0_i32_1 = arith.constant 0 : i32
    return %arg0, %c0_i32, %c0_i32_0 : i32, i32, i32
  }
  func.func @transform_2(%arg0: i32) -> (i32, i32) {
    %c0_i32 = arith.constant 0 : i32
    %c0_i32_0 = arith.constant 0 : i32
    %c0_i32_1 = arith.constant 0 : i32
    return %c0_i32, %c0_i32_0 : i32, i32
  }
  func.func @transform_3(%arg0: i32) -> (i32, i32) {
    %c0_i32 = arith.constant 0 : i32
    %c0_i32_0 = arith.constant 0 : i32
    %c0_i32_1 = arith.constant 0 : i32
    return %c0_i32, %c0_i32_0 : i32, i32
  }
  func.func @transform_4(%arg0: i32) -> (i32, i32) {
    %c0_i32 = arith.constant 0 : i32
    %c0_i32_0 = arith.constant 0 : i32
    %c0_i32_1 = arith.constant 0 : i32
    return %c0_i32, %c0_i32_0 : i32, i32
  }
  func.func @transform_5(%arg0: i32) -> (i32, i32) {
    %c0_i32 = arith.constant 0 : i32
    %c0_i32_0 = arith.constant 0 : i32
    %c0_i32_1 = arith.constant 0 : i32
    return %c0_i32, %c0_i32_0 : i32, i32
  }
  func.func @transform_6(%arg0: i32) -> (i32, i32) {
    %c0_i32 = arith.constant 0 : i32
    %c0_i32_0 = arith.constant 0 : i32
    %c0_i32_1 = arith.constant 0 : i32
    return %c0_i32, %c0_i32_0 : i32, i32
  }
  func.func @transform_7(%arg0: i32) -> (i32, i32) {
    %c0_i32 = arith.constant 0 : i32
    %c0_i32_0 = arith.constant 0 : i32
    %c0_i32_1 = arith.constant 0 : i32
    return %c0_i32, %c0_i32_0 : i32, i32
  }
  func.func @transform_8(%arg0: i32) -> (i32, i32) {
    %c0_i32 = arith.constant 0 : i32
    %c0_i32_0 = arith.constant 0 : i32
    %c0_i32_1 = arith.constant 0 : i32
    return %c0_i32, %c0_i32_0 : i32, i32
  }
  func.func @transform_9(%arg0: i32) -> (i32, i32, i32) {
    %c0_i32 = arith.constant 0 : i32
    %c0_i32_0 = arith.constant 0 : i32
    %c0_i32_1 = arith.constant 0 : i32
    return %arg0, %c0_i32, %c0_i32_0 : i32, i32, i32
  }
}

</mosaic_0001>

<llo_original>
// kernel: tpu_custom_call.1
$region0: #{tpu_custom_call.1}
  #allocation0 [shape = 'u32[]', space=smem, size = 0x4, offset = 0x4, fixed_abs, tag = 'smem constant byte address 0x4 - core index']
  #allocation1 [shape = 'u32[72,128]{1,0:T(1,128)}', space=vmem, size = 0x9000, scoped, tag = 'internal scratch']
  %s0 = inlined_call_operand.hbm [shape: bf16[8,16,96], index: 0, kind: input, shape index: {}]
  %s1 = inlined_call_operand.hbm [shape: bf16[8,16,64], index: 1, kind: input, shape index: {}]
  %s2 = inlined_call_operand.hbm [shape: bf16[16,96], index: 2, kind: input, shape index: {}]
  %s3 = inlined_call_operand.hbm [shape: bf16[96,128], index: 3, kind: input, shape index: {}]
  %s4 = inlined_call_operand.vmem [shape: f32[1,128], index: 4, kind: input, shape index: {}]
  %s5 = inlined_call_operand.hbm [shape: bf16[64,64], index: 5, kind: input, shape index: {}]
  %s6 = inlined_call_operand.vmem [shape: f32[1,64], index: 6, kind: input, shape index: {}]
  %s7 = inlined_call_operand.hbm [shape: bf16[64,64], index: 7, kind: input, shape index: {}]
  %s8 = inlined_call_operand.vmem [shape: f32[1,64], index: 8, kind: input, shape index: {}]
  %s9 = inlined_call_operand.hbm [shape: f32[8,16,64], index: 9, kind: output, shape index: {}]
  %s10 = sld [smem:[#allocation0]]
  $region70: #{tpu_custom_call.1} parent=0
    _
  %s12 = ssub.s32 1, %s10
  %s13 = scalar_select 0, %s12, %s10
  $region1: #{tpu_custom_call.1} parent=0
    #allocation2 [shape = 'u8[32768]{0}', space=vmem, size = 0x8000, scoped, tag = 'input window, operand 0, single buffered']
    #allocation3 [shape = 's32[1]{0}', space=sflag, size = 0x4, scoped, tag = 'scoped memory for tpu_custom_call.1']
    #allocation4 [shape = 's32[1]{0}', space=sflag, size = 0x4, scoped, tag = 'scoped memory for tpu_custom_call.1']
    #allocation5 [shape = 'u8[32768]{0}', space=vmem, size = 0x8000, scoped, tag = 'input window, operand 1, single buffered']
    #allocation6 [shape = 's32[1]{0}', space=sflag, size = 0x4, scoped, tag = 'scoped memory for tpu_custom_call.1']
    #allocation7 [shape = 'u8[4096]{0}', space=vmem, size = 0x1000, scoped, tag = 'input window, operand 2, single buffered']
    #allocation8 [shape = 'u8[24576]{0}', space=vmem, size = 0x6000, scoped, tag = 'input window, operand 3, single buffered']
    #allocation9 [shape = 's32[1]{0}', space=sflag, size = 0x4, scoped, tag = 'scoped memory for tpu_custom_call.1']
    #allocation10 [shape = 'u8[16384]{0}', space=vmem, size = 0x4000, scoped, tag = 'input window, operand 5, single buffered']
    #allocation11 [shape = 'u8[16384]{0}', space=vmem, size = 0x4000, scoped, tag = 'input window, operand 7, single buffered']
    #allocation12 [shape = 's32[1]{0}', space=sflag, size = 0x4, scoped, tag = 'scoped memory for tpu_custom_call.1']
    #allocation13 [shape = 'u8[65536]{0}', space=vmem, size = 0x10000, scoped, tag = 'output window, operand 0, single buffered']
    %14 = vsyncpa [#allocation3], 0
    %15 = vsyncpa [#allocation6], 0
    %16 = vsyncpa [#allocation9], 0
    %17 = vsyncpa [#allocation12], 0
    %18 = vsyncpa [#allocation4], 0
    // Predicated region
    $region2: #{tpu_custom_call.1} parent=1 // pred_check
      _
    $region3: #{tpu_custom_call.1} parent=1 // pred_check_branch
      %20 = sbr.rel (0) target = $region5
    $region4: #{tpu_custom_call.1} parent=1 // pred_region
      %22 = vsyncadd [#allocation3], 0
      %s23 = sshll.u32 %s0, 4
      %s24 = int_to_ptr.hbm [resolvable:$true] %s23
      %s25 = sshll.u32 [#allocation2], 4
      %s26 = int_to_ptr.vmem [resolvable:$true] %s25
      %31 = dma.hbm_to_vmem [thread:$0]  %s24, 1024, %s26, [#allocation3], 64, 64, 4
    $region5: #{tpu_custom_call.1} parent=1 // pred_fallthru
      _
    // Predicated region
    $region6: #{tpu_custom_call.1} parent=1 // pred_check
      _
    $region7: #{tpu_custom_call.1} parent=1 // pred_check_branch
      %33 = sbr.rel (0) target = $region9
    $region8: #{tpu_custom_call.1} parent=1 // pred_region
      %35 = vsyncadd [#allocation6], 0
      %s36 = sshll.u32 %s1, 4
      %s37 = int_to_ptr.hbm [resolvable:$true] %s36
      %s38 = sshll.u32 [#allocation5], 4
      %s39 = int_to_ptr.vmem [resolvable:$true] %s38
      %44 = dma.hbm_to_vmem [thread:$0]  %s37, 1024, %s39, [#allocation6], 64, 64, 4
    $region9: #{tpu_custom_call.1} parent=1 // pred_fallthru
      _
    // Predicated region
    $region10: #{tpu_custom_call.1} parent=1 // pred_check
      _
    $region11: #{tpu_custom_call.1} parent=1 // pred_check_branch
      %46 = sbr.rel (0) target = $region13
    $region12: #{tpu_custom_call.1} parent=1 // pred_region
      %48 = vsyncadd [#allocation6], 0
      %s49 = sshll.u32 %s2, 4
      %s50 = int_to_ptr.hbm [resolvable:$true] %s49
      %s51 = sshll.u32 [#allocation7], 4
      %s52 = int_to_ptr.vmem [resolvable:$true] %s51
      %57 = dma.hbm_to_vmem [thread:$0]  %s50, 128, %s52, [#allocation6], 64, 64, 4
    $region13: #{tpu_custom_call.1} parent=1 // pred_fallthru
      _
    // Predicated region
    $region14: #{tpu_custom_call.1} parent=1 // pred_check
      _
    $region15: #{tpu_custom_call.1} parent=1 // pred_check_branch
      %59 = sbr.rel (0) target = $region17
    $region16: #{tpu_custom_call.1} parent=1 // pred_region
      %61 = vsyncadd [#allocation9], 0
      %s62 = sshll.u32 %s3, 4
      %s63 = int_to_ptr.hbm [resolvable:$true] %s62
      %s64 = sshll.u32 [#allocation8], 4
      %s65 = int_to_ptr.vmem [resolvable:$true] %s64
      %70 = dma.hbm_to_vmem [thread:$0]  %s63, 768, %s65, [#allocation9], 64, 64, 4
    $region17: #{tpu_custom_call.1} parent=1 // pred_fallthru
      _
    // Predicated region
    $region18: #{tpu_custom_call.1} parent=1 // pred_check
      _
    $region19: #{tpu_custom_call.1} parent=1 // pred_check_branch
      %72 = sbr.rel (0) target = $region21
    $region20: #{tpu_custom_call.1} parent=1 // pred_region
      _
    $region21: #{tpu_custom_call.1} parent=1 // pred_fallthru
      _
    // Predicated region
    $region22: #{tpu_custom_call.1} parent=1 // pred_check
      _
    $region23: #{tpu_custom_call.1} parent=1 // pred_check_branch
      %74 = sbr.rel (0) target = $region25
    $region24: #{tpu_custom_call.1} parent=1 // pred_region
      %76 = vsyncadd [#allocation9], 0
      %s77 = sshll.u32 %s5, 4
      %s78 = int_to_ptr.hbm [resolvable:$true] %s77
      %s79 = sshll.u32 [#allocation10], 4
      %s80 = int_to_ptr.vmem [resolvable:$true] %s79
      %85 = dma.hbm_to_vmem [thread:$0]  %s78, 512, %s80, [#allocation9], 64, 64, 4
    $region25: #{tpu_custom_call.1} parent=1 // pred_fallthru
      _
    // Predicated region
    $region26: #{tpu_custom_call.1} parent=1 // pred_check
      _
    $region27: #{tpu_custom_call.1} parent=1 // pred_check_branch
      %87 = sbr.rel (0) target = $region29
    $region28: #{tpu_custom_call.1} parent=1 // pred_region
      _
    $region29: #{tpu_custom_call.1} parent=1 // pred_fallthru
      _
    // Predicated region
    $region30: #{tpu_custom_call.1} parent=1 // pred_check
      _
    $region31: #{tpu_custom_call.1} parent=1 // pred_check_branch
      %89 = sbr.rel (0) target = $region33
    $region32: #{tpu_custom_call.1} parent=1 // pred_region
      %91 = vsyncadd [#allocation12], 0
      %s92 = sshll.u32 %s7, 4
      %s93 = int_to_ptr.hbm [resolvable:$true] %s92
      %s94 = sshll.u32 [#allocation11], 4
      %s95 = int_to_ptr.vmem [resolvable:$true] %s94
      %100 = dma.hbm_to_vmem [thread:$0]  %s93, 512, %s95, [#allocation12], 64, 64, 4
    $region33: #{tpu_custom_call.1} parent=1 // pred_fallthru
      _
    // Predicated region
    $region34: #{tpu_custom_call.1} parent=1 // pred_check
      _
    $region35: #{tpu_custom_call.1} parent=1 // pred_check_branch
      %102 = sbr.rel (0) target = $region37
    $region36: #{tpu_custom_call.1} parent=1 // pred_region
      _
    $region37: #{tpu_custom_call.1} parent=1 // pred_fallthru
      _
    // Predicated region
    $region38: #{tpu_custom_call.1} parent=1 // pred_check
      _
    $region39: #{tpu_custom_call.1} parent=1 // pred_check_branch
      %104 = sbr.rel (0) target = $region41
    $region40: #{tpu_custom_call.1} parent=1 // pred_region
      %106 = dma.done [#allocation3], 1024
    $region41: #{tpu_custom_call.1} parent=1 // pred_fallthru
      _
    // Predicated region
    $region42: #{tpu_custom_call.1} parent=1 // pred_check
      _
    $region43: #{tpu_custom_call.1} parent=1 // pred_check_branch
      %108 = sbr.rel (0) target = $region45
    $region44: #{tpu_custom_call.1} parent=1 // pred_region
      %110 = dma.done [#allocation6], 1024
    $region45: #{tpu_custom_call.1} parent=1 // pred_fallthru
      _
    // Predicated region
    $region46: #{tpu_custom_call.1} parent=1 // pred_check
      _
    $region47: #{tpu_custom_call.1} parent=1 // pred_check_branch
      %112 = sbr.rel (0) target = $region49
    $region48: #{tpu_custom_call.1} parent=1 // pred_region
      %114 = dma.done [#allocation6], 128
    $region49: #{tpu_custom_call.1} parent=1 // pred_fallthru
      _
    // Predicated region
    $region50: #{tpu_custom_call.1} parent=1 // pred_check
      _
    $region51: #{tpu_custom_call.1} parent=1 // pred_check_branch
      %116 = sbr.rel (0) target = $region53
    $region52: #{tpu_custom_call.1} parent=1 // pred_region
      %118 = dma.done [#allocation9], 768
    $region53: #{tpu_custom_call.1} parent=1 // pred_fallthru
      _
    // Predicated region
    $region54: #{tpu_custom_call.1} parent=1 // pred_check
      _
    $region55: #{tpu_custom_call.1} parent=1 // pred_check_branch
      %120 = sbr.rel (0) target = $region57
    $region56: #{tpu_custom_call.1} parent=1 // pred_region
      %122 = dma.done [#allocation9], 512
    $region57: #{tpu_custom_call.1} parent=1 // pred_fallthru
      _
    // Predicated region
    $region58: #{tpu_custom_call.1} parent=1 // pred_check
      _
    $region59: #{tpu_custom_call.1} parent=1 // pred_check_branch
      %124 = sbr.rel (0) target = $region61
    $region60: #{tpu_custom_call.1} parent=1 // pred_region
      %126 = dma.done [#allocation12], 512
    $region61: #{tpu_custom_call.1} parent=1 // pred_fallthru
      _
    %v128 = vld [vmem:[#allocation2] sm:$0xf]
    %v129 = vld [vmem:[#allocation2 + $0x4] sm:$0xf]
    %v130 = vld [vmem:[#allocation2 + $0x8] sm:$0xf]
    %v131 = vld [vmem:[#allocation2 + $0xc] sm:$0xf]
    %v132 = vld [vmem:[#allocation2 + $0x10] sm:$0xf]
    %v133 = vld [vmem:[#allocation2 + $0x14] sm:$0xf]
    %v134 = vld [vmem:[#allocation2 + $0x18] sm:$0xf]
    %v135 = vld [vmem:[#allocation2 + $0x1c] sm:$0xf]
    %v136 = vld [vmem:[#allocation2 + $0x20] sm:$0xf]
    %v137 = vld [vmem:[#allocation2 + $0x24] sm:$0xf]
    %v138 = vld [vmem:[#allocation2 + $0x28] sm:$0xf]
    %v139 = vld [vmem:[#allocation2 + $0x2c] sm:$0xf]
    %v140 = vld [vmem:[#allocation2 + $0x30] sm:$0xf]
    %v141 = vld [vmem:[#allocation2 + $0x34] sm:$0xf]
    %v142 = vld [vmem:[#allocation2 + $0x38] sm:$0xf]
    %v143 = vld [vmem:[#allocation2 + $0x3c] sm:$0xf]
    %v144 = vld [vmem:[#allocation7] sm:$0xf]
    %v145 = vld [vmem:[#allocation7 + $0x4] sm:$0xf]
    %v146 = vunpack.c.l.bf16 %v128
    %v147 = vunpack.c.l.bf16 %v129
    %v148 = vunpack.c.l.bf16 %v130
    %v149 = vunpack.c.l.bf16 %v131
    %v150 = vunpack.c.l.bf16 %v132
    %v151 = vunpack.c.l.bf16 %v133
    %v152 = vunpack.c.l.bf16 %v134
    %v153 = vunpack.c.l.bf16 %v135
    %v154 = vunpack.c.l.bf16 %v136
    %v155 = vunpack.c.l.bf16 %v137
    %v156 = vunpack.c.l.bf16 %v138
    %v157 = vunpack.c.l.bf16 %v139
    %v158 = vunpack.c.l.bf16 %v140
    %v159 = vunpack.c.l.bf16 %v141
    %v160 = vunpack.c.l.bf16 %v142
    %v161 = vunpack.c.l.bf16 %v143
    %v162 = vunpack.c.l.bf16 %v144
    %v163 = vunpack.c.l.bf16 %v145
    %v164 = vadd.f32 %v146, %v162
    %v165 = vadd.f32 %v147, %v163
    %v166 = vadd.f32 %v148, %v162
    %v167 = vadd.f32 %v149, %v163
    %v168 = vadd.f32 %v150, %v162
    %v169 = vadd.f32 %v151, %v163
    %v170 = vadd.f32 %v152, %v162
    %v171 = vadd.f32 %v153, %v163
    %v172 = vadd.f32 %v154, %v162
    %v173 = vadd.f32 %v155, %v163
    %v174 = vadd.f32 %v156, %v162
    %v175 = vadd.f32 %v157, %v163
    %v176 = vadd.f32 %v158, %v162
    %v177 = vadd.f32 %v159, %v163
    %v178 = vadd.f32 %v160, %v162
    %v179 = vadd.f32 %v161, %v163
    %v180 = vpack.c.bf16 %v164, %v164
    %v181 = vpack.c.bf16 %v165, %v165
    %v182 = vpack.c.bf16 %v166, %v166
    %v183 = vpack.c.bf16 %v167, %v167
    %v184 = vpack.c.bf16 %v168, %v168
    %v185 = vpack.c.bf16 %v169, %v169
    %v186 = vpack.c.bf16 %v170, %v170
    %v187 = vpack.c.bf16 %v171, %v171
    %v188 = vpack.c.bf16 %v172, %v172
    %v189 = vpack.c.bf16 %v173, %v173
    %v190 = vpack.c.bf16 %v174, %v174
    %v191 = vpack.c.bf16 %v175, %v175
    %v192 = vpack.c.bf16 %v176, %v176
    %v193 = vpack.c.bf16 %v177, %v177
    %v194 = vpack.c.bf16 %v178, %v178
    %v195 = vpack.c.bf16 %v179, %v179
    %v196 = vld [vmem:[#allocation5] sm:$0xf]
    %v197 = vld [vmem:[#allocation5 + $0x4] sm:$0xf]
    %v198 = vld [vmem:[#allocation5 + $0x8] sm:$0xf]
    %v199 = vld [vmem:[#allocation5 + $0xc] sm:$0xf]
    %v200 = vld [vmem:[#allocation5 + $0x10] sm:$0xf]
    %v201 = vld [vmem:[#allocation5 + $0x14] sm:$0xf]
    %v202 = vld [vmem:[#allocation5 + $0x18] sm:$0xf]
    %v203 = vld [vmem:[#allocation5 + $0x1c] sm:$0xf]
    %v204 = vld [vmem:[#allocation5 + $0x20] sm:$0xf]
    %v205 = vld [vmem:[#allocation5 + $0x24] sm:$0xf]
    %v206 = vld [vmem:[#allocation5 + $0x28] sm:$0xf]
    %v207 = vld [vmem:[#allocation5 + $0x2c] sm:$0xf]
    %v208 = vld [vmem:[#allocation5 + $0x30] sm:$0xf]
    %v209 = vld [vmem:[#allocation5 + $0x34] sm:$0xf]
    %v210 = vld [vmem:[#allocation5 + $0x38] sm:$0xf]
    %v211 = vld [vmem:[#allocation5 + $0x3c] sm:$0xf]
    %v212 = vld [vmem:[#allocation8] sm:$0xf]
    %v213 = vld [vmem:[#allocation8 + $0x4] sm:$0xf]
    %v214 = vld [vmem:[#allocation8 + $0x8] sm:$0xf]
    %v215 = vld [vmem:[#allocation8 + $0xc] sm:$0xf]
    %v216 = vld [vmem:[#allocation8 + $0x10] sm:$0xf]
    %v217 = vld [vmem:[#allocation8 + $0x14] sm:$0xf]
    %v218 = vld [vmem:[#allocation8 + $0x18] sm:$0xf]
    %v219 = vld [vmem:[#allocation8 + $0x1c] sm:$0xf]
    %v220 = vld [vmem:[#allocation8 + $0x20] sm:$0xf]
    %v221 = vld [vmem:[#allocation8 + $0x24] sm:$0xf]
    %v222 = vld [vmem:[#allocation8 + $0x28] sm:$0xf]
    %v223 = vld [vmem:[#allocation8 + $0x2c] sm:$0xf]
    %v224 = vld [vmem:[%s4] sm:$0x1]
    %v226 = vperm.slane %v224, 0
    %v244 = vunpack.c.l.b16 %v180
    %v245 = vunpack.c.l.b16 %v181
    %v246 = vunpack.c.l.b16 %v182
    %v247 = vunpack.c.l.b16 %v183
    %v248 = vunpack.c.l.b16 %v184
    %v249 = vunpack.c.l.b16 %v185
    %v250 = vunpack.c.l.b16 %v186
    %v251 = vunpack.c.l.b16 %v187
    %v252 = vunpack.c.l.b16 %v188
    %v253 = vunpack.c.l.b16 %v189
    %v254 = vunpack.c.l.b16 %v190
    %v255 = vunpack.c.l.b16 %v191
    %v256 = vunpack.c.l.b16 %v192
    %v257 = vunpack.c.l.b16 %v193
    %v258 = vunpack.c.l.b16 %v194
    %v259 = vunpack.c.l.b16 %v195
    %v260 = vpack.c.b16 %v245, %v244
    %v261 = vpack.c.b16 %v247, %v246
    %v262 = vpack.c.b16 %v249, %v248
    %v263 = vpack.c.b16 %v251, %v250
    %v264 = vpack.c.b16 %v253, %v252
    %v265 = vpack.c.b16 %v255, %v254
    %v266 = vpack.c.b16 %v257, %v256
    %v267 = vpack.c.b16 %v259, %v258
    %v280 = vunpack.c.l.b16 %v212
    %v281 = vunpack.c.l.b16 %v213
    %v282 = vunpack.c.l.b16 %v214
    %v283 = vunpack.c.l.b16 %v215
    %v284 = vunpack.c.l.b16 %v216
    %v285 = vunpack.c.l.b16 %v217
    %v286 = vunpack.c.l.b16 %v218
    %v287 = vunpack.c.l.b16 %v219
    %v288 = vunpack.c.l.b16 %v220
    %v289 = vunpack.c.l.b16 %v221
    %v290 = vunpack.c.l.b16 %v222
    %v291 = vunpack.c.l.b16 %v223
    %v292 = vpack.c.b16 %v281, %v280
    %v293 = vpack.c.b16 %v283, %v282
    %v294 = vpack.c.b16 %v285, %v284
    %v295 = vpack.c.b16 %v287, %v286
    %v296 = vpack.c.b16 %v289, %v288
    %v297 = vpack.c.b16 %v291, %v290
    %vm304 = vcmask 785408
    %v306 = vsel %vm304, %v260, 0
    %v309 = vsel %vm304, %v261, 0
    %v312 = vsel %vm304, %v262, 0
    %v315 = vsel %vm304, %v263, 0
    %v318 = vsel %vm304, %v264, 0
    %v321 = vsel %vm304, %v265, 0
    %v324 = vsel %vm304, %v266, 0
    %v327 = vsel %vm304, %v267, 0
    %329 = vmatpush.bf16.msra.mxu0 0
    %330 = vmatpush.bf16.msra.mxu0 0
    %331 = vmatpush.bf16.msra.mxu0 %v297
    %332 = vmatpush.bf16.msra.mxu0 %v296
    %333 = vmatpush.bf16.msra.mxu0 %v295
    %334 = vmatpush.bf16.msra.mxu0 %v294
    %335 = vmatpush.bf16.msra.mxu0 %v293
    %336 = vmatpush.bf16.msra.mxu0 %v292
    %337 = vmatmul.bf16.gmra.mxu0 %v306
    %v338 = vpop.f32.mrf.mxu0
    %v339 = vadd.f32 %v226, %v338
    %v340 = vpop.f32.mrf.mxu0
    %v341 = vadd.f32 %v226, %v340
    %342 = vmatmul.bf16.gmra.mxu0 %v309
    %v343 = vpop.f32.mrf.mxu0
    %v344 = vadd.f32 %v226, %v343
    %v345 = vpop.f32.mrf.mxu0
    %v346 = vadd.f32 %v226, %v345
    %347 = vmatmul.bf16.gmra.mxu0 %v312
    %v348 = vpop.f32.mrf.mxu0
    %v349 = vadd.f32 %v226, %v348
    %v350 = vpop.f32.mrf.mxu0
    %v351 = vadd.f32 %v226, %v350
    %352 = vmatmul.bf16.gmra.mxu0 %v315
    %v353 = vpop.f32.mrf.mxu0
    %v354 = vadd.f32 %v226, %v353
    %v355 = vpop.f32.mrf.mxu0
    %v356 = vadd.f32 %v226, %v355
    %357 = vmatmul.bf16.gmra.mxu0 %v318
    %v358 = vpop.f32.mrf.mxu0
    %v359 = vadd.f32 %v226, %v358
    %v360 = vpop.f32.mrf.mxu0
    %v361 = vadd.f32 %v226, %v360
    %362 = vmatmul.bf16.gmra.mxu0 %v321
    %v363 = vpop.f32.mrf.mxu0
    %v364 = vadd.f32 %v226, %v363
    %v365 = vpop.f32.mrf.mxu0
    %v366 = vadd.f32 %v226, %v365
    %367 = vmatmul.bf16.gmra.mxu0 %v324
    %v368 = vpop.f32.mrf.mxu0
    %v369 = vadd.f32 %v226, %v368
    %v370 = vpop.f32.mrf.mxu0
    %v371 = vadd.f32 %v226, %v370
    %372 = vmatmul.bf16.gmra.mxu0 %v327
    %v373 = vpop.f32.mrf.mxu0
    %v374 = vadd.f32 %v226, %v373
    %v375 = vpop.f32.mrf.mxu0
    %v376 = vadd.f32 %v226, %v375
    %377 = vdwg.mxu0
    %v378 = vld [vmem:[#allocation10] sm:$0xf]
    %v379 = vld [vmem:[#allocation10 + $0x4] sm:$0xf]
    %v380 = vld [vmem:[#allocation10 + $0x8] sm:$0xf]
    %v381 = vld [vmem:[#allocation10 + $0xc] sm:$0xf]
    %v382 = vld [vmem:[#allocation10 + $0x10] sm:$0xf]
    %v383 = vld [vmem:[#allocation10 + $0x14] sm:$0xf]
    %v384 = vld [vmem:[#allocation10 + $0x18] sm:$0xf]
    %v385 = vld [vmem:[#allocation10 + $0x1c] sm:$0xf]
    %v386 = vld [vmem:[%s6] sm:$0x1]
    %v388 = vperm.slane %v386, 0
    %v406 = vunpack.c.l.b16 %v196
    %v407 = vunpack.c.l.b16 %v197
    %v408 = vunpack.c.l.b16 %v198
    %v409 = vunpack.c.l.b16 %v199
    %v410 = vunpack.c.l.b16 %v200
    %v411 = vunpack.c.l.b16 %v201
    %v412 = vunpack.c.l.b16 %v202
    %v413 = vunpack.c.l.b16 %v203
    %v414 = vunpack.c.l.b16 %v204
    %v415 = vunpack.c.l.b16 %v205
    %v416 = vunpack.c.l.b16 %v206
    %v417 = vunpack.c.l.b16 %v207
    %v418 = vunpack.c.l.b16 %v208
    %v419 = vunpack.c.l.b16 %v209
    %v420 = vunpack.c.l.b16 %v210
    %v421 = vunpack.c.l.b16 %v211
    %v422 = vpack.c.b16 %v407, %v406
    %v423 = vpack.c.b16 %v409, %v408
    %v424 = vpack.c.b16 %v411, %v410
    %v425 = vpack.c.b16 %v413, %v412
    %v426 = vpack.c.b16 %v415, %v414
    %v427 = vpack.c.b16 %v417, %v416
    %v428 = vpack.c.b16 %v419, %v418
    %v429 = vpack.c.b16 %v421, %v420
    %v438 = vunpack.c.l.b16 %v378
    %v439 = vunpack.c.l.b16 %v379
    %v440 = vunpack.c.l.b16 %v380
    %v441 = vunpack.c.l.b16 %v381
    %v442 = vunpack.c.l.b16 %v382
    %v443 = vunpack.c.l.b16 %v383
    %v444 = vunpack.c.l.b16 %v384
    %v445 = vunpack.c.l.b16 %v385
    %v446 = vpack.c.b16 %v439, %v438
    %v447 = vpack.c.b16 %v441, %v440
    %v448 = vpack.c.b16 %v443, %v442
    %v449 = vpack.c.b16 %v445, %v444
    %vm454 = vcmask 523264
    %v456 = vsel %vm454, %v422, 0
    %v459 = vsel %vm454, %v423, 0
    %v462 = vsel %vm454, %v424, 0
    %v465 = vsel %vm454, %v425, 0
    %v468 = vsel %vm454, %v426, 0
    %v471 = vsel %vm454, %v427, 0
    %v474 = vsel %vm454, %v428, 0
    %v477 = vsel %vm454, %v429, 0
    %479 = vmatpush.bf16.msra.mxu0 0
    %480 = vmatpush.bf16.msra.mxu0 0
    %481 = vmatpush.bf16.msra.mxu0 0
    %482 = vmatpush.bf16.msra.mxu0 0
    %483 = vmatpush.bf16.msra.mxu0 %v449
    %484 = vmatpush.bf16.msra.mxu0 %v448
    %485 = vmatpush.bf16.msra.mxu0 %v447
    %486 = vmatpush.bf16.msra.mxu0 %v446
    %487 = vmatmul.bf16.gmra.mxu0 %v456
    %v488 = vpop.f32.mrf.mxu0
    %v489 = vadd.f32 %v388, %v488
    %v490 = vpop.f32.mrf.mxu0
    %v491 = vadd.f32 %v388, %v490
    %492 = vmatmul.bf16.gmra.mxu0 %v459
    %v493 = vpop.f32.mrf.mxu0
    %v494 = vadd.f32 %v388, %v493
    %v495 = vpop.f32.mrf.mxu0
    %v496 = vadd.f32 %v388, %v495
    %497 = vmatmul.bf16.gmra.mxu0 %v462
    %v498 = vpop.f32.mrf.mxu0
    %v499 = vadd.f32 %v388, %v498
    %v500 = vpop.f32.mrf.mxu0
    %v501 = vadd.f32 %v388, %v500
    %502 = vmatmul.bf16.gmra.mxu0 %v465
    %v503 = vpop.f32.mrf.mxu0
    %v504 = vadd.f32 %v388, %v503
    %v505 = vpop.f32.mrf.mxu0
    %v506 = vadd.f32 %v388, %v505
    %507 = vmatmul.bf16.gmra.mxu0 %v468
    %v508 = vpop.f32.mrf.mxu0
    %v509 = vadd.f32 %v388, %v508
    %v510 = vpop.f32.mrf.mxu0
    %v511 = vadd.f32 %v388, %v510
    %512 = vmatmul.bf16.gmra.mxu0 %v471
    %v513 = vpop.f32.mrf.mxu0
    %v514 = vadd.f32 %v388, %v513
    %v515 = vpop.f32.mrf.mxu0
    %v516 = vadd.f32 %v388, %v515
    %517 = vmatmul.bf16.gmra.mxu0 %v474
    %v518 = vpop.f32.mrf.mxu0
    %v519 = vadd.f32 %v388, %v518
    %v520 = vpop.f32.mrf.mxu0
    %v521 = vadd.f32 %v388, %v520
    %522 = vmatmul.bf16.gmra.mxu0 %v477
    %v523 = vpop.f32.mrf.mxu0
    %v524 = vadd.f32 %v388, %v523
    %v525 = vpop.f32.mrf.mxu0
    %v526 = vadd.f32 %v388, %v525
    %527 = vdwg.mxu0
    %v528 = vpack.c.bf16 %v339, %v339
    %v529 = vpack.c.bf16 %v341, %v341
    %v530 = vpack.c.bf16 %v344, %v344
    %v531 = vpack.c.bf16 %v346, %v346
    %v532 = vpack.c.bf16 %v349, %v349
    %v533 = vpack.c.bf16 %v351, %v351
    %v534 = vpack.c.bf16 %v354, %v354
    %v535 = vpack.c.bf16 %v356, %v356
    %v536 = vpack.c.bf16 %v359, %v359
    %v537 = vpack.c.bf16 %v361, %v361
    %v538 = vpack.c.bf16 %v364, %v364
    %v539 = vpack.c.bf16 %v366, %v366
    %v540 = vpack.c.bf16 %v369, %v369
    %v541 = vpack.c.bf16 %v371, %v371
    %v542 = vpack.c.bf16 %v374, %v374
    %v543 = vpack.c.bf16 %v376, %v376
    %v544 = vpack.c.bf16 %v489, %v489
    %v545 = vpack.c.bf16 %v491, %v491
    %v546 = vpack.c.bf16 %v494, %v494
    %v547 = vpack.c.bf16 %v496, %v496
    %v548 = vpack.c.bf16 %v499, %v499
    %v549 = vpack.c.bf16 %v501, %v501
    %v550 = vpack.c.bf16 %v504, %v504
    %v551 = vpack.c.bf16 %v506, %v506
    %v552 = vpack.c.bf16 %v509, %v509
    %v553 = vpack.c.bf16 %v511, %v511
    %v554 = vpack.c.bf16 %v514, %v514
    %v555 = vpack.c.bf16 %v516, %v516
    %v556 = vpack.c.bf16 %v519, %v519
    %v557 = vpack.c.bf16 %v521, %v521
    %v558 = vpack.c.bf16 %v524, %v524
    %v559 = vpack.c.bf16 %v526, %v526
    %v562 = vunpack.c.l.b16 %v528
    %v563 = vunpack.c.l.b16 %v529
    %v564 = vpack.c.b16 %v563, %v562
    %565 = vrot.lane.b32.xlu0 %v564, 64
    %v566 = vpop.permute.xlu0 %565
    %vm567 = vcmask 261120
    %v569 = vsel %vm567, %v564, 0
    %v572 = vsel %vm567, %v566, 0
    %574 = vmatpush.bf16.xpose.msra.mxu0 0
    %575 = vmatpush.bf16.xpose.msra.mxu0 0
    %576 = vmatpush.bf16.xpose.msra.mxu0 0
    %577 = vmatpush.bf16.xpose.msra.mxu0 0
    %578 = vmatpush.bf16.xpose.msra.mxu0 0
    %579 = vmatpush.bf16.xpose.msra.mxu0 0
    %580 = vmatpush.bf16.xpose.msra.mxu0 0
    %581 = vmatpush.bf16.xpose.msra.mxu0 %v572
    %582 = vmatmul.bf16.gmra.mxu0 %v569
    %v583 = vpop.f32.mrf.mxu0
    %v584 = vadd.f32 0.0, %v583
    %v585 = vpop.f32.mrf.mxu0
    %v586 = vadd.f32 0.0, %v585
    %587 = vdwg.mxu0
    %v590 = vunpack.c.l.b16 %v530
    %v591 = vunpack.c.l.b16 %v531
    %v592 = vpack.c.b16 %v591, %v590
    %593 = vrot.lane.b32.xlu0 %v592, 64
    %v594 = vpop.permute.xlu0 %593
    %v596 = vsel %vm567, %v592, 0
    %v599 = vsel %vm567, %v594, 0
    %601 = vmatpush.bf16.xpose.msra.mxu0 0
    %602 = vmatpush.bf16.xpose.msra.mxu0 0
    %603 = vmatpush.bf16.xpose.msra.mxu0 0
    %604 = vmatpush.bf16.xpose.msra.mxu0 0
    %605 = vmatpush.bf16.xpose.msra.mxu0 0
    %606 = vmatpush.bf16.xpose.msra.mxu0 0
    %607 = vmatpush.bf16.xpose.msra.mxu0 0
    %608 = vmatpush.bf16.xpose.msra.mxu0 %v599
    %609 = vmatmul.bf16.gmra.mxu0 %v596
    %v610 = vpop.f32.mrf.mxu0
    %v611 = vadd.f32 0.0, %v610
    %v612 = vpop.f32.mrf.mxu0
    %v613 = vadd.f32 0.0, %v612
    %614 = vdwg.mxu0
    %v617 = vunpack.c.l.b16 %v532
    %v618 = vunpack.c.l.b16 %v533
    %v619 = vpack.c.b16 %v618, %v617
    %620 = vrot.lane.b32.xlu0 %v619, 64
    %v621 = vpop.permute.xlu0 %620
    %v623 = vsel %vm567, %v619, 0
    %v626 = vsel %vm567, %v621, 0
    %628 = vmatpush.bf16.xpose.msra.mxu0 0
    %629 = vmatpush.bf16.xpose.msra.mxu0 0
    %630 = vmatpush.bf16.xpose.msra.mxu0 0
    %631 = vmatpush.bf16.xpose.msra.mxu0 0
    %632 = vmatpush.bf16.xpose.msra.mxu0 0
    %633 = vmatpush.bf16.xpose.msra.mxu0 0
    %634 = vmatpush.bf16.xpose.msra.mxu0 0
    %635 = vmatpush.bf16.xpose.msra.mxu0 %v626
    %636 = vmatmul.bf16.gmra.mxu0 %v623
    %v637 = vpop.f32.mrf.mxu0
    %v638 = vadd.f32 0.0, %v637
    %v639 = vpop.f32.mrf.mxu0
    %v640 = vadd.f32 0.0, %v639
    %641 = vdwg.mxu0
    %v644 = vunpack.c.l.b16 %v534
    %v645 = vunpack.c.l.b16 %v535
    %v646 = vpack.c.b16 %v645, %v644
    %647 = vrot.lane.b32.xlu0 %v646, 64
    %v648 = vpop.permute.xlu0 %647
    %v650 = vsel %vm567, %v646, 0
    %v653 = vsel %vm567, %v648, 0
    %655 = vmatpush.bf16.xpose.msra.mxu0 0
    %656 = vmatpush.bf16.xpose.msra.mxu0 0
    %657 = vmatpush.bf16.xpose.msra.mxu0 0
    %658 = vmatpush.bf16.xpose.msra.mxu0 0
    %659 = vmatpush.bf16.xpose.msra.mxu0 0
    %660 = vmatpush.bf16.xpose.msra.mxu0 0
    %661 = vmatpush.bf16.xpose.msra.mxu0 0
    %662 = vmatpush.bf16.xpose.msra.mxu0 %v653
    %663 = vmatmul.bf16.gmra.mxu0 %v650
    %v664 = vpop.f32.mrf.mxu0
    %v665 = vadd.f32 0.0, %v664
    %v666 = vpop.f32.mrf.mxu0
    %v667 = vadd.f32 0.0, %v666
    %668 = vdwg.mxu0
    %v671 = vunpack.c.l.b16 %v536
    %v672 = vunpack.c.l.b16 %v537
    %v673 = vpack.c.b16 %v672, %v671
    %674 = vrot.lane.b32.xlu0 %v673, 64
    %v675 = vpop.permute.xlu0 %674
    %v677 = vsel %vm567, %v673, 0
    %v680 = vsel %vm567, %v675, 0
    %682 = vmatpush.bf16.xpose.msra.mxu0 0
    %683 = vmatpush.bf16.xpose.msra.mxu0 0
    %684 = vmatpush.bf16.xpose.msra.mxu0 0
    %685 = vmatpush.bf16.xpose.msra.mxu0 0
    %686 = vmatpush.bf16.xpose.msra.mxu0 0
    %687 = vmatpush.bf16.xpose.msra.mxu0 0
    %688 = vmatpush.bf16.xpose.msra.mxu0 0
    %689 = vmatpush.bf16.xpose.msra.mxu0 %v680
    %690 = vmatmul.bf16.gmra.mxu0 %v677
    %v691 = vpop.f32.mrf.mxu0
    %v692 = vadd.f32 0.0, %v691
    %v693 = vpop.f32.mrf.mxu0
    %v694 = vadd.f32 0.0, %v693
    %695 = vdwg.mxu0
    %v698 = vunpack.c.l.b16 %v538
    %v699 = vunpack.c.l.b16 %v539
    %v700 = vpack.c.b16 %v699, %v698
    %701 = vrot.lane.b32.xlu0 %v700, 64
    %v702 = vpop.permute.xlu0 %701
    %v704 = vsel %vm567, %v700, 0
    %v707 = vsel %vm567, %v702, 0
    %709 = vmatpush.bf16.xpose.msra.mxu0 0
    %710 = vmatpush.bf16.xpose.msra.mxu0 0
    %711 = vmatpush.bf16.xpose.msra.mxu0 0
    %712 = vmatpush.bf16.xpose.msra.mxu0 0
    %713 = vmatpush.bf16.xpose.msra.mxu0 0
    %714 = vmatpush.bf16.xpose.msra.mxu0 0
    %715 = vmatpush.bf16.xpose.msra.mxu0 0
    %716 = vmatpush.bf16.xpose.msra.mxu0 %v707
    %717 = vmatmul.bf16.gmra.mxu0 %v704
    %v718 = vpop.f32.mrf.mxu0
    %v719 = vadd.f32 0.0, %v718
    %v720 = vpop.f32.mrf.mxu0
    %v721 = vadd.f32 0.0, %v720
    %722 = vdwg.mxu0
    %v725 = vunpack.c.l.b16 %v540
    %v726 = vunpack.c.l.b16 %v541
    %v727 = vpack.c.b16 %v726, %v725
    %728 = vrot.lane.b32.xlu0 %v727, 64
    %v729 = vpop.permute.xlu0 %728
    %v731 = vsel %vm567, %v727, 0
    %v734 = vsel %vm567, %v729, 0
    %736 = vmatpush.bf16.xpose.msra.mxu0 0
    %737 = vmatpush.bf16.xpose.msra.mxu0 0
    %738 = vmatpush.bf16.xpose.msra.mxu0 0
    %739 = vmatpush.bf16.xpose.msra.mxu0 0
    %740 = vmatpush.bf16.xpose.msra.mxu0 0
    %741 = vmatpush.bf16.xpose.msra.mxu0 0
    %742 = vmatpush.bf16.xpose.msra.mxu0 0
    %743 = vmatpush.bf16.xpose.msra.mxu0 %v734
    %744 = vmatmul.bf16.gmra.mxu0 %v731
    %v745 = vpop.f32.mrf.mxu0
    %v746 = vadd.f32 0.0, %v745
    %v747 = vpop.f32.mrf.mxu0
    %v748 = vadd.f32 0.0, %v747
    %749 = vdwg.mxu0
    %v752 = vunpack.c.l.b16 %v542
    %v753 = vunpack.c.l.b16 %v543
    %v754 = vpack.c.b16 %v753, %v752
    %755 = vrot.lane.b32.xlu0 %v754, 64
    %v756 = vpop.permute.xlu0 %755
    %v758 = vsel %vm567, %v754, 0
    %v761 = vsel %vm567, %v756, 0
    %763 = vmatpush.bf16.xpose.msra.mxu0 0
    %764 = vmatpush.bf16.xpose.msra.mxu0 0
    %765 = vmatpush.bf16.xpose.msra.mxu0 0
    %766 = vmatpush.bf16.xpose.msra.mxu0 0
    %767 = vmatpush.bf16.xpose.msra.mxu0 0
    %768 = vmatpush.bf16.xpose.msra.mxu0 0
    %769 = vmatpush.bf16.xpose.msra.mxu0 0
    %770 = vmatpush.bf16.xpose.msra.mxu0 %v761
    %771 = vmatmul.bf16.gmra.mxu0 %v758
    %v772 = vpop.f32.mrf.mxu0
    %v773 = vadd.f32 0.0, %v772
    %v774 = vpop.f32.mrf.mxu0
    %v775 = vadd.f32 0.0, %v774
    %776 = vdwg.mxu0
    %v777 = vmul.f32 %v584, 0.17677669
    %v778 = vmul.f32 %v586, 0.17677669
    %v779 = vmul.f32 %v611, 0.17677669
    %v780 = vmul.f32 %v613, 0.17677669
    %v781 = vmul.f32 %v638, 0.17677669
    %v782 = vmul.f32 %v640, 0.17677669
    %v783 = vmul.f32 %v665, 0.17677669
    %v784 = vmul.f32 %v667, 0.17677669
    %v785 = vmul.f32 %v692, 0.17677669
    %v786 = vmul.f32 %v694, 0.17677669
    %v787 = vmul.f32 %v719, 0.17677669
    %v788 = vmul.f32 %v721, 0.17677669
    %v789 = vmul.f32 %v746, 0.17677669
    %v790 = vmul.f32 %v748, 0.17677669
    %v791 = vmul.f32 %v773, 0.17677669
    %v792 = vmul.f32 %v775, 0.17677669
    %vm793 = vcmask 130048
    %v794 = vsel %vm793, %v777, -inf
    %795 = vmax.xlane.f32.xlu0 %v794
    %v796 = vpop.xlane.xlu0 %795
    %v797 = vsel %vm793, %v778, -inf
    %798 = vmax.xlane.f32.xlu0 %v797
    %v799 = vpop.xlane.xlu0 %798
    %v800 = vsel %vm793, %v779, -inf
    %801 = vmax.xlane.f32.xlu0 %v800
    %v802 = vpop.xlane.xlu0 %801
    %v803 = vsel %vm793, %v780, -inf
    %804 = vmax.xlane.f32.xlu0 %v803
    %v805 = vpop.xlane.xlu0 %804
    %v806 = vsel %vm793, %v781, -inf
    %807 = vmax.xlane.f32.xlu0 %v806
    %v808 = vpop.xlane.xlu0 %807
    %v809 = vsel %vm793, %v782, -inf
    %810 = vmax.xlane.f32.xlu0 %v809
    %v811 = vpop.xlane.xlu0 %810
    %v812 = vsel %vm793, %v783, -inf
    %813 = vmax.xlane.f32.xlu0 %v812
    %v814 = vpop.xlane.xlu0 %813
    %v815 = vsel %vm793, %v784, -inf
    %816 = vmax.xlane.f32.xlu0 %v815
    %v817 = vpop.xlane.xlu0 %816
    %v818 = vsel %vm793, %v785, -inf
    %819 = vmax.xlane.f32.xlu0 %v818
    %v820 = vpop.xlane.xlu0 %819
    %v821 = vsel %vm793, %v786, -inf
    %822 = vmax.xlane.f32.xlu0 %v821
    %v823 = vpop.xlane.xlu0 %822
    %v824 = vsel %vm793, %v787, -inf
    %825 = vmax.xlane.f32.xlu0 %v824
    %v826 = vpop.xlane.xlu0 %825
    %v827 = vsel %vm793, %v788, -inf
    %828 = vmax.xlane.f32.xlu0 %v827
    %v829 = vpop.xlane.xlu0 %828
    %v830 = vsel %vm793, %v789, -inf
    %831 = vmax.xlane.f32.xlu0 %v830
    %v832 = vpop.xlane.xlu0 %831
    %v833 = vsel %vm793, %v790, -inf
    %834 = vmax.xlane.f32.xlu0 %v833
    %v835 = vpop.xlane.xlu0 %834
    %v836 = vsel %vm793, %v791, -inf
    %837 = vmax.xlane.f32.xlu0 %v836
    %v838 = vpop.xlane.xlu0 %837
    %v839 = vsel %vm793, %v792, -inf
    %840 = vmax.xlane.f32.xlu0 %v839
    %v841 = vpop.xlane.xlu0 %840
    %v842 = vsub.f32 %v777, %v796
    %v843 = vsub.f32 %v778, %v799
    %v844 = vsub.f32 %v779, %v802
    %v845 = vsub.f32 %v780, %v805
    %v846 = vsub.f32 %v781, %v808
    %v847 = vsub.f32 %v782, %v811
    %v848 = vsub.f32 %v783, %v814
    %v849 = vsub.f32 %v784, %v817
    %v850 = vsub.f32 %v785, %v820
    %v851 = vsub.f32 %v786, %v823
    %v852 = vsub.f32 %v787, %v826
    %v853 = vsub.f32 %v788, %v829
    %v854 = vsub.f32 %v789, %v832
    %v855 = vsub.f32 %v790, %v835
    %v856 = vsub.f32 %v791, %v838
    %v857 = vsub.f32 %v792, %v841
    %v858 = vmul.f32 %v842, 1.442695
    %v859 = vpow.pop %v858
    %v860 = vmul.f32 %v843, 1.442695
    %v861 = vpow.pop %v860
    %v862 = vmul.f32 %v844, 1.442695
    %v863 = vpow.pop %v862
    %v864 = vmul.f32 %v845, 1.442695
    %v865 = vpow.pop %v864
    %v866 = vmul.f32 %v846, 1.442695
    %v867 = vpow.pop %v866
    %v868 = vmul.f32 %v847, 1.442695
    %v869 = vpow.pop %v868
    %v870 = vmul.f32 %v848, 1.442695
    %v871 = vpow.pop %v870
    %v872 = vmul.f32 %v849, 1.442695
    %v873 = vpow.pop %v872
    %v874 = vmul.f32 %v850, 1.442695
    %v875 = vpow.pop %v874
    %v876 = vmul.f32 %v851, 1.442695
    %v877 = vpow.pop %v876
    %v878 = vmul.f32 %v852, 1.442695
    %v879 = vpow.pop %v878
    %v880 = vmul.f32 %v853, 1.442695
    %v881 = vpow.pop %v880
    %v882 = vmul.f32 %v854, 1.442695
    %v883 = vpow.pop %v882
    %v884 = vmul.f32 %v855, 1.442695
    %v885 = vpow.pop %v884
    %v886 = vmul.f32 %v856, 1.442695
    %v887 = vpow.pop %v886
    %v888 = vmul.f32 %v857, 1.442695
    %v889 = vpow.pop %v888
    %v890 = vsel %vm793, %v859, 0.0
    %891 = vadd.xlane.f32.xlu0 %v890
    %v892 = vpop.xlane.xlu0 %891
    %v893 = vsel %vm793, %v861, 0.0
    %894 = vadd.xlane.f32.xlu0 %v893
    %v895 = vpop.xlane.xlu0 %894
    %v896 = vsel %vm793, %v863, 0.0
    %897 = vadd.xlane.f32.xlu0 %v896
    %v898 = vpop.xlane.xlu0 %897
    %v899 = vsel %vm793, %v865, 0.0
    %900 = vadd.xlane.f32.xlu0 %v899
    %v901 = vpop.xlane.xlu0 %900
    %v902 = vsel %vm793, %v867, 0.0
    %903 = vadd.xlane.f32.xlu0 %v902
    %v904 = vpop.xlane.xlu0 %903
    %v905 = vsel %vm793, %v869, 0.0
    %906 = vadd.xlane.f32.xlu0 %v905
    %v907 = vpop.xlane.xlu0 %906
    %v908 = vsel %vm793, %v871, 0.0
    %909 = vadd.xlane.f32.xlu0 %v908
    %v910 = vpop.xlane.xlu0 %909
    %v911 = vsel %vm793, %v873, 0.0
    %912 = vadd.xlane.f32.xlu0 %v911
    %v913 = vpop.xlane.xlu0 %912
    %v914 = vsel %vm793, %v875, 0.0
    %915 = vadd.xlane.f32.xlu0 %v914
    %v916 = vpop.xlane.xlu0 %915
    %v917 = vsel %vm793, %v877, 0.0
    %918 = vadd.xlane.f32.xlu0 %v917
    %v919 = vpop.xlane.xlu0 %918
    %v920 = vsel %vm793, %v879, 0.0
    %921 = vadd.xlane.f32.xlu0 %v920
    %v922 = vpop.xlane.xlu0 %921
    %v923 = vsel %vm793, %v881, 0.0
    %924 = vadd.xlane.f32.xlu0 %v923
    %v925 = vpop.xlane.xlu0 %924
    %v926 = vsel %vm793, %v883, 0.0
    %927 = vadd.xlane.f32.xlu0 %v926
    %v928 = vpop.xlane.xlu0 %927
    %v929 = vsel %vm793, %v885, 0.0
    %930 = vadd.xlane.f32.xlu0 %v929
    %v931 = vpop.xlane.xlu0 %930
    %v932 = vsel %vm793, %v887, 0.0
    %933 = vadd.xlane.f32.xlu0 %v932
    %v934 = vpop.xlane.xlu0 %933
    %v935 = vsel %vm793, %v889, 0.0
    %936 = vadd.xlane.f32.xlu0 %v935
    %v937 = vpop.xlane.xlu0 %936
    %v938 = vrcp.pop %v892
    %v939 = vrcp.pop %v895
    %v940 = vrcp.pop %v898
    %v941 = vrcp.pop %v901
    %v942 = vrcp.pop %v904
    %v943 = vrcp.pop %v907
    %v944 = vrcp.pop %v910
    %v945 = vrcp.pop %v913
    %v946 = vrcp.pop %v916
    %v947 = vrcp.pop %v919
    %v948 = vrcp.pop %v922
    %v949 = vrcp.pop %v925
    %v950 = vrcp.pop %v928
    %v951 = vrcp.pop %v931
    %v952 = vrcp.pop %v934
    %v953 = vrcp.pop %v937
    %v954 = vmul.f32 %v859, %v938
    %v955 = vmul.f32 %v861, %v939
    %v956 = vmul.f32 %v863, %v940
    %v957 = vmul.f32 %v865, %v941
    %v958 = vmul.f32 %v867, %v942
    %v959 = vmul.f32 %v869, %v943
    %v960 = vmul.f32 %v871, %v944
    %v961 = vmul.f32 %v873, %v945
    %v962 = vmul.f32 %v875, %v946
    %v963 = vmul.f32 %v877, %v947
    %v964 = vmul.f32 %v879, %v948
    %v965 = vmul.f32 %v881, %v949
    %v966 = vmul.f32 %v883, %v950
    %v967 = vmul.f32 %v885, %v951
    %v968 = vmul.f32 %v887, %v952
    %v969 = vmul.f32 %v889, %v953
    %v970 = vpack.c.bf16 %v954, %v954
    %v971 = vpack.c.bf16 %v955, %v955
    %v972 = vpack.c.bf16 %v956, %v956
    %v973 = vpack.c.bf16 %v957, %v957
    %v974 = vpack.c.bf16 %v958, %v958
    %v975 = vpack.c.bf16 %v959, %v959
    %v976 = vpack.c.bf16 %v960, %v960
    %v977 = vpack.c.bf16 %v961, %v961
    %v978 = vpack.c.bf16 %v962, %v962
    %v979 = vpack.c.bf16 %v963, %v963
    %v980 = vpack.c.bf16 %v964, %v964
    %v981 = vpack.c.bf16 %v965, %v965
    %v982 = vpack.c.bf16 %v966, %v966
    %v983 = vpack.c.bf16 %v967, %v967
    %v984 = vpack.c.bf16 %v968, %v968
    %v985 = vpack.c.bf16 %v969, %v969
    %v988 = vunpack.c.l.b16 %v970
    %v989 = vunpack.c.l.b16 %v971
    %v990 = vpack.c.b16 %v989, %v988
    %v993 = vunpack.c.l.b16 %v544
    %v994 = vunpack.c.l.b16 %v545
    %v995 = vpack.c.b16 %v994, %v993
    %v998 = vsel %vm793, %v990, 0
    %1000 = vmatpush.bf16.msra.mxu0 0
    %1001 = vmatpush.bf16.msra.mxu0 0
    %1002 = vmatpush.bf16.msra.mxu0 0
    %1003 = vmatpush.bf16.msra.mxu0 0
    %1004 = vmatpush.bf16.msra.mxu0 0
    %1005 = vmatpush.bf16.msra.mxu0 0
    %1006 = vmatpush.bf16.msra.mxu0 0
    %1007 = vmatpush.bf16.msra.mxu0 %v995
    %1008 = vmatmul.bf16.gmra.mxu0 %v998
    %v1009 = vpop.f32.mrf.mxu0
    %v1010 = vadd.f32 0.0, %v1009
    %v1011 = vpop.f32.mrf.mxu0
    %v1012 = vadd.f32 0.0, %v1011
    %1013 = vdwg.mxu0
    %v1016 = vunpack.c.l.b16 %v972
    %v1017 = vunpack.c.l.b16 %v973
    %v1018 = vpack.c.b16 %v1017, %v1016
    %v1021 = vunpack.c.l.b16 %v546
    %v1022 = vunpack.c.l.b16 %v547
    %v1023 = vpack.c.b16 %v1022, %v1021
    %v1026 = vsel %vm793, %v1018, 0
    %1028 = vmatpush.bf16.msra.mxu0 0
    %1029 = vmatpush.bf16.msra.mxu0 0
    %1030 = vmatpush.bf16.msra.mxu0 0
    %1031 = vmatpush.bf16.msra.mxu0 0
    %1032 = vmatpush.bf16.msra.mxu0 0
    %1033 = vmatpush.bf16.msra.mxu0 0
    %1034 = vmatpush.bf16.msra.mxu0 0
    %1035 = vmatpush.bf16.msra.mxu0 %v1023
    %1036 = vmatmul.bf16.gmra.mxu0 %v1026
    %v1037 = vpop.f32.mrf.mxu0
    %v1038 = vadd.f32 0.0, %v1037
    %v1039 = vpop.f32.mrf.mxu0
    %v1040 = vadd.f32 0.0, %v1039
    %1041 = vdwg.mxu0
    %v1044 = vunpack.c.l.b16 %v974
    %v1045 = vunpack.c.l.b16 %v975
    %v1046 = vpack.c.b16 %v1045, %v1044
    %v1049 = vunpack.c.l.b16 %v548
    %v1050 = vunpack.c.l.b16 %v549
    %v1051 = vpack.c.b16 %v1050, %v1049
    %v1054 = vsel %vm793, %v1046, 0
    %1056 = vmatpush.bf16.msra.mxu0 0
    %1057 = vmatpush.bf16.msra.mxu0 0
    %1058 = vmatpush.bf16.msra.mxu0 0
    %1059 = vmatpush.bf16.msra.mxu0 0
    %1060 = vmatpush.bf16.msra.mxu0 0
    %1061 = vmatpush.bf16.msra.mxu0 0
    %1062 = vmatpush.bf16.msra.mxu0 0
    %1063 = vmatpush.bf16.msra.mxu0 %v1051
    %1064 = vmatmul.bf16.gmra.mxu0 %v1054
    %v1065 = vpop.f32.mrf.mxu0
    %v1066 = vadd.f32 0.0, %v1065
    %v1067 = vpop.f32.mrf.mxu0
    %v1068 = vadd.f32 0.0, %v1067
    %1069 = vdwg.mxu0
    %v1072 = vunpack.c.l.b16 %v976
    %v1073 = vunpack.c.l.b16 %v977
    %v1074 = vpack.c.b16 %v1073, %v1072
    %v1077 = vunpack.c.l.b16 %v550
    %v1078 = vunpack.c.l.b16 %v551
    %v1079 = vpack.c.b16 %v1078, %v1077
    %v1082 = vsel %vm793, %v1074, 0
    %1084 = vmatpush.bf16.msra.mxu0 0
    %1085 = vmatpush.bf16.msra.mxu0 0
    %1086 = vmatpush.bf16.msra.mxu0 0
    %1087 = vmatpush.bf16.msra.mxu0 0
    %1088 = vmatpush.bf16.msra.mxu0 0
    %1089 = vmatpush.bf16.msra.mxu0 0
    %1090 = vmatpush.bf16.msra.mxu0 0
    %1091 = vmatpush.bf16.msra.mxu0 %v1079
    %1092 = vmatmul.bf16.gmra.mxu0 %v1082
    %v1093 = vpop.f32.mrf.mxu0
    %v1094 = vadd.f32 0.0, %v1093
    %v1095 = vpop.f32.mrf.mxu0
    %v1096 = vadd.f32 0.0, %v1095
    %1097 = vdwg.mxu0
    %v1100 = vunpack.c.l.b16 %v978
    %v1101 = vunpack.c.l.b16 %v979
    %v1102 = vpack.c.b16 %v1101, %v1100
    %v1105 = vunpack.c.l.b16 %v552
    %v1106 = vunpack.c.l.b16 %v553
    %v1107 = vpack.c.b16 %v1106, %v1105
    %v1110 = vsel %vm793, %v1102, 0
    %1112 = vmatpush.bf16.msra.mxu0 0
    %1113 = vmatpush.bf16.msra.mxu0 0
    %1114 = vmatpush.bf16.msra.mxu0 0
    %1115 = vmatpush.bf16.msra.mxu0 0
    %1116 = vmatpush.bf16.msra.mxu0 0
    %1117 = vmatpush.bf16.msra.mxu0 0
    %1118 = vmatpush.bf16.msra.mxu0 0
    %1119 = vmatpush.bf16.msra.mxu0 %v1107
    %1120 = vmatmul.bf16.gmra.mxu0 %v1110
    %v1121 = vpop.f32.mrf.mxu0
    %v1122 = vadd.f32 0.0, %v1121
    %v1123 = vpop.f32.mrf.mxu0
    %v1124 = vadd.f32 0.0, %v1123
    %1125 = vdwg.mxu0
    %v1128 = vunpack.c.l.b16 %v980
    %v1129 = vunpack.c.l.b16 %v981
    %v1130 = vpack.c.b16 %v1129, %v1128
    %v1133 = vunpack.c.l.b16 %v554
    %v1134 = vunpack.c.l.b16 %v555
    %v1135 = vpack.c.b16 %v1134, %v1133
    %v1138 = vsel %vm793, %v1130, 0
    %1140 = vmatpush.bf16.msra.mxu0 0
    %1141 = vmatpush.bf16.msra.mxu0 0
    %1142 = vmatpush.bf16.msra.mxu0 0
    %1143 = vmatpush.bf16.msra.mxu0 0
    %1144 = vmatpush.bf16.msra.mxu0 0
    %1145 = vmatpush.bf16.msra.mxu0 0
    %1146 = vmatpush.bf16.msra.mxu0 0
    %1147 = vmatpush.bf16.msra.mxu0 %v1135
    %1148 = vmatmul.bf16.gmra.mxu0 %v1138
    %v1149 = vpop.f32.mrf.mxu0
    %v1150 = vadd.f32 0.0, %v1149
    %v1151 = vpop.f32.mrf.mxu0
    %v1152 = vadd.f32 0.0, %v1151
    %1153 = vdwg.mxu0
    %v1156 = vunpack.c.l.b16 %v982
    %v1157 = vunpack.c.l.b16 %v983
    %v1158 = vpack.c.b16 %v1157, %v1156
    %v1161 = vunpack.c.l.b16 %v556
    %v1162 = vunpack.c.l.b16 %v557
    %v1163 = vpack.c.b16 %v1162, %v1161
    %v1166 = vsel %vm793, %v1158, 0
    %1168 = vmatpush.bf16.msra.mxu0 0
    %1169 = vmatpush.bf16.msra.mxu0 0
    %1170 = vmatpush.bf16.msra.mxu0 0
    %1171 = vmatpush.bf16.msra.mxu0 0
    %1172 = vmatpush.bf16.msra.mxu0 0
    %1173 = vmatpush.bf16.msra.mxu0 0
    %1174 = vmatpush.bf16.msra.mxu0 0
    %1175 = vmatpush.bf16.msra.mxu0 %v1163
    %1176 = vmatmul.bf16.gmra.mxu0 %v1166
    %v1177 = vpop.f32.mrf.mxu0
    %v1178 = vadd.f32 0.0, %v1177
    %v1179 = vpop.f32.mrf.mxu0
    %v1180 = vadd.f32 0.0, %v1179
    %1181 = vdwg.mxu0
    %v1184 = vunpack.c.l.b16 %v984
    %v1185 = vunpack.c.l.b16 %v985
    %v1186 = vpack.c.b16 %v1185, %v1184
    %v1189 = vunpack.c.l.b16 %v558
    %v1190 = vunpack.c.l.b16 %v559
    %v1191 = vpack.c.b16 %v1190, %v1189
    %v1194 = vsel %vm793, %v1186, 0
    %1196 = vmatpush.bf16.msra.mxu0 0
    %1197 = vmatpush.bf16.msra.mxu0 0
    %1198 = vmatpush.bf16.msra.mxu0 0
    %1199 = vmatpush.bf16.msra.mxu0 0
    %1200 = vmatpush.bf16.msra.mxu0 0
    %1201 = vmatpush.bf16.msra.mxu0 0
    %1202 = vmatpush.bf16.msra.mxu0 0
    %1203 = vmatpush.bf16.msra.mxu0 %v1191
    %1204 = vmatmul.bf16.gmra.mxu0 %v1194
    %v1205 = vpop.f32.mrf.mxu0
    %v1206 = vadd.f32 0.0, %v1205
    %v1207 = vpop.f32.mrf.mxu0
    %v1208 = vadd.f32 0.0, %v1207
    %1209 = vdwg.mxu0
    %1210 = vrot.lane.b32.xlu0 %v564, 96
    %v1211 = vpop.permute.xlu0 %1210
    %1212 = vrot.lane.b32.xlu0 %v564, 32
    %v1213 = vpop.permute.xlu0 %1212
    %v1215 = vsel %vm567, %v1211, 0
    %v1218 = vsel %vm567, %v1213, 0
    %1220 = vmatpush.bf16.xpose.msra.mxu0 0
    %1221 = vmatpush.bf16.xpose.msra.mxu0 0
    %1222 = vmatpush.bf16.xpose.msra.mxu0 0
    %1223 = vmatpush.bf16.xpose.msra.mxu0 0
    %1224 = vmatpush.bf16.xpose.msra.mxu0 0
    %1225 = vmatpush.bf16.xpose.msra.mxu0 0
    %1226 = vmatpush.bf16.xpose.msra.mxu0 0
    %1227 = vmatpush.bf16.xpose.msra.mxu0 %v1218
    %1228 = vmatmul.bf16.gmra.mxu0 %v1215
    %v1229 = vpop.f32.mrf.mxu0
    %v1230 = vadd.f32 0.0, %v1229
    %v1231 = vpop.f32.mrf.mxu0
    %v1232 = vadd.f32 0.0, %v1231
    %1233 = vdwg.mxu0
    %1234 = vrot.lane.b32.xlu0 %v592, 96
    %v1235 = vpop.permute.xlu0 %1234
    %1236 = vrot.lane.b32.xlu0 %v592, 32
    %v1237 = vpop.permute.xlu0 %1236
    %v1239 = vsel %vm567, %v1235, 0
    %v1242 = vsel %vm567, %v1237, 0
    %1244 = vmatpush.bf16.xpose.msra.mxu0 0
    %1245 = vmatpush.bf16.xpose.msra.mxu0 0
    %1246 = vmatpush.bf16.xpose.msra.mxu0 0
    %1247 = vmatpush.bf16.xpose.msra.mxu0 0
    %1248 = vmatpush.bf16.xpose.msra.mxu0 0
    %1249 = vmatpush.bf16.xpose.msra.mxu0 0
    %1250 = vmatpush.bf16.xpose.msra.mxu0 0
    %1251 = vmatpush.bf16.xpose.msra.mxu0 %v1242
    %1252 = vmatmul.bf16.gmra.mxu0 %v1239
    %v1253 = vpop.f32.mrf.mxu0
    %v1254 = vadd.f32 0.0, %v1253
    %v1255 = vpop.f32.mrf.mxu0
    %v1256 = vadd.f32 0.0, %v1255
    %1257 = vdwg.mxu0
    %1258 = vrot.lane.b32.xlu0 %v619, 96
    %v1259 = vpop.permute.xlu0 %1258
    %1260 = vrot.lane.b32.xlu0 %v619, 32
    %v1261 = vpop.permute.xlu0 %1260
    %v1263 = vsel %vm567, %v1259, 0
    %v1266 = vsel %vm567, %v1261, 0
    %1268 = vmatpush.bf16.xpose.msra.mxu0 0
    %1269 = vmatpush.bf16.xpose.msra.mxu0 0
    %1270 = vmatpush.bf16.xpose.msra.mxu0 0
    %1271 = vmatpush.bf16.xpose.msra.mxu0 0
    %1272 = vmatpush.bf16.xpose.msra.mxu0 0
    %1273 = vmatpush.bf16.xpose.msra.mxu0 0
    %1274 = vmatpush.bf16.xpose.msra.mxu0 0
    %1275 = vmatpush.bf16.xpose.msra.mxu0 %v1266
    %1276 = vmatmul.bf16.gmra.mxu0 %v1263
    %v1277 = vpop.f32.mrf.mxu0
    %v1278 = vadd.f32 0.0, %v1277
    %v1279 = vpop.f32.mrf.mxu0
    %v1280 = vadd.f32 0.0, %v1279
    %1281 = vdwg.mxu0
    %1282 = vrot.lane.b32.xlu0 %v646, 96
    %v1283 = vpop.permute.xlu0 %1282
    %1284 = vrot.lane.b32.xlu0 %v646, 32
    %v1285 = vpop.permute.xlu0 %1284
    %v1287 = vsel %vm567, %v1283, 0
    %v1290 = vsel %vm567, %v1285, 0
    %1292 = vmatpush.bf16.xpose.msra.mxu0 0
    %1293 = vmatpush.bf16.xpose.msra.mxu0 0
    %1294 = vmatpush.bf16.xpose.msra.mxu0 0
    %1295 = vmatpush.bf16.xpose.msra.mxu0 0
    %1296 = vmatpush.bf16.xpose.msra.mxu0 0
    %1297 = vmatpush.bf16.xpose.msra.mxu0 0
    %1298 = vmatpush.bf16.xpose.msra.mxu0 0
    %1299 = vmatpush.bf16.xpose.msra.mxu0 %v1290
    %1300 = vmatmul.bf16.gmra.mxu0 %v1287
    %v1301 = vpop.f32.mrf.mxu0
    %v1302 = vadd.f32 0.0, %v1301
    %v1303 = vpop.f32.mrf.mxu0
    %v1304 = vadd.f32 0.0, %v1303
    %1305 = vdwg.mxu0
    %1306 = vrot.lane.b32.xlu0 %v673, 96
    %v1307 = vpop.permute.xlu0 %1306
    %1308 = vrot.lane.b32.xlu0 %v673, 32
    %v1309 = vpop.permute.xlu0 %1308
    %v1311 = vsel %vm567, %v1307, 0
    %v1314 = vsel %vm567, %v1309, 0
    %1316 = vmatpush.bf16.xpose.msra.mxu0 0
    %1317 = vmatpush.bf16.xpose.msra.mxu0 0
    %1318 = vmatpush.bf16.xpose.msra.mxu0 0
    %1319 = vmatpush.bf16.xpose.msra.mxu0 0
    %1320 = vmatpush.bf16.xpose.msra.mxu0 0
    %1321 = vmatpush.bf16.xpose.msra.mxu0 0
    %1322 = vmatpush.bf16.xpose.msra.mxu0 0
    %1323 = vmatpush.bf16.xpose.msra.mxu0 %v1314
    %1324 = vmatmul.bf16.gmra.mxu0 %v1311
    %v1325 = vpop.f32.mrf.mxu0
    %v1326 = vadd.f32 0.0, %v1325
    %v1327 = vpop.f32.mrf.mxu0
    %v1328 = vadd.f32 0.0, %v1327
    %1329 = vdwg.mxu0
    %1330 = vrot.lane.b32.xlu0 %v700, 96
    %v1331 = vpop.permute.xlu0 %1330
    %1332 = vrot.lane.b32.xlu0 %v700, 32
    %v1333 = vpop.permute.xlu0 %1332
    %v1335 = vsel %vm567, %v1331, 0
    %v1338 = vsel %vm567, %v1333, 0
    %1340 = vmatpush.bf16.xpose.msra.mxu0 0
    %1341 = vmatpush.bf16.xpose.msra.mxu0 0
    %1342 = vmatpush.bf16.xpose.msra.mxu0 0
    %1343 = vmatpush.bf16.xpose.msra.mxu0 0
    %1344 = vmatpush.bf16.xpose.msra.mxu0 0
    %1345 = vmatpush.bf16.xpose.msra.mxu0 0
    %1346 = vmatpush.bf16.xpose.msra.mxu0 0
    %1347 = vmatpush.bf16.xpose.msra.mxu0 %v1338
    %1348 = vmatmul.bf16.gmra.mxu0 %v1335
    %v1349 = vpop.f32.mrf.mxu0
    %v1350 = vadd.f32 0.0, %v1349
    %v1351 = vpop.f32.mrf.mxu0
    %v1352 = vadd.f32 0.0, %v1351
    %1353 = vdwg.mxu0
    %1354 = vrot.lane.b32.xlu0 %v727, 96
    %v1355 = vpop.permute.xlu0 %1354
    %1356 = vrot.lane.b32.xlu0 %v727, 32
    %v1357 = vpop.permute.xlu0 %1356
    %v1359 = vsel %vm567, %v1355, 0
    %v1362 = vsel %vm567, %v1357, 0
    %1364 = vmatpush.bf16.xpose.msra.mxu0 0
    %1365 = vmatpush.bf16.xpose.msra.mxu0 0
    %1366 = vmatpush.bf16.xpose.msra.mxu0 0
    %1367 = vmatpush.bf16.xpose.msra.mxu0 0
    %1368 = vmatpush.bf16.xpose.msra.mxu0 0
    %1369 = vmatpush.bf16.xpose.msra.mxu0 0
    %1370 = vmatpush.bf16.xpose.msra.mxu0 0
    %1371 = vmatpush.bf16.xpose.msra.mxu0 %v1362
    %1372 = vmatmul.bf16.gmra.mxu0 %v1359
    %v1373 = vpop.f32.mrf.mxu0
    %v1374 = vadd.f32 0.0, %v1373
    %v1375 = vpop.f32.mrf.mxu0
    %v1376 = vadd.f32 0.0, %v1375
    %1377 = vdwg.mxu0
    %1378 = vrot.lane.b32.xlu0 %v754, 96
    %v1379 = vpop.permute.xlu0 %1378
    %1380 = vrot.lane.b32.xlu0 %v754, 32
    %v1381 = vpop.permute.xlu0 %1380
    %v1383 = vsel %vm567, %v1379, 0
    %v1386 = vsel %vm567, %v1381, 0
    %1388 = vmatpush.bf16.xpose.msra.mxu0 0
    %1389 = vmatpush.bf16.xpose.msra.mxu0 0
    %1390 = vmatpush.bf16.xpose.msra.mxu0 0
    %1391 = vmatpush.bf16.xpose.msra.mxu0 0
    %1392 = vmatpush.bf16.xpose.msra.mxu0 0
    %1393 = vmatpush.bf16.xpose.msra.mxu0 0
    %1394 = vmatpush.bf16.xpose.msra.mxu0 0
    %1395 = vmatpush.bf16.xpose.msra.mxu0 %v1386
    %1396 = vmatmul.bf16.gmra.mxu0 %v1383
    %v1397 = vpop.f32.mrf.mxu0
    %v1398 = vadd.f32 0.0, %v1397
    %v1399 = vpop.f32.mrf.mxu0
    %v1400 = vadd.f32 0.0, %v1399
    %1401 = vdwg.mxu0
    %v1402 = vmul.f32 %v1230, 0.17677669
    %v1403 = vmul.f32 %v1232, 0.17677669
    %v1404 = vmul.f32 %v1254, 0.17677669
    %v1405 = vmul.f32 %v1256, 0.17677669
    %v1406 = vmul.f32 %v1278, 0.17677669
    %v1407 = vmul.f32 %v1280, 0.17677669
    %v1408 = vmul.f32 %v1302, 0.17677669
    %v1409 = vmul.f32 %v1304, 0.17677669
    %v1410 = vmul.f32 %v1326, 0.17677669
    %v1411 = vmul.f32 %v1328, 0.17677669
    %v1412 = vmul.f32 %v1350, 0.17677669
    %v1413 = vmul.f32 %v1352, 0.17677669
    %v1414 = vmul.f32 %v1374, 0.17677669
    %v1415 = vmul.f32 %v1376, 0.17677669
    %v1416 = vmul.f32 %v1398, 0.17677669
    %v1417 = vmul.f32 %v1400, 0.17677669
    %v1418 = vsel %vm793, %v1402, -inf
    %1419 = vmax.xlane.f32.xlu0 %v1418
    %v1420 = vpop.xlane.xlu0 %1419
    %v1421 = vsel %vm793, %v1403, -inf
    %1422 = vmax.xlane.f32.xlu0 %v1421
    %v1423 = vpop.xlane.xlu0 %1422
    %v1424 = vsel %vm793, %v1404, -inf
    %1425 = vmax.xlane.f32.xlu0 %v1424
    %v1426 = vpop.xlane.xlu0 %1425
    %v1427 = vsel %vm793, %v1405, -inf
    %1428 = vmax.xlane.f32.xlu0 %v1427
    %v1429 = vpop.xlane.xlu0 %1428
    %v1430 = vsel %vm793, %v1406, -inf
    %1431 = vmax.xlane.f32.xlu0 %v1430
    %v1432 = vpop.xlane.xlu0 %1431
    %v1433 = vsel %vm793, %v1407, -inf
    %1434 = vmax.xlane.f32.xlu0 %v1433
    %v1435 = vpop.xlane.xlu0 %1434
    %v1436 = vsel %vm793, %v1408, -inf
    %1437 = vmax.xlane.f32.xlu0 %v1436
    %v1438 = vpop.xlane.xlu0 %1437
    %v1439 = vsel %vm793, %v1409, -inf
    %1440 = vmax.xlane.f32.xlu0 %v1439
    %v1441 = vpop.xlane.xlu0 %1440
    %v1442 = vsel %vm793, %v1410, -inf
    %1443 = vmax.xlane.f32.xlu0 %v1442
    %v1444 = vpop.xlane.xlu0 %1443
    %v1445 = vsel %vm793, %v1411, -inf
    %1446 = vmax.xlane.f32.xlu0 %v1445
    %v1447 = vpop.xlane.xlu0 %1446
    %v1448 = vsel %vm793, %v1412, -inf
    %1449 = vmax.xlane.f32.xlu0 %v1448
    %v1450 = vpop.xlane.xlu0 %1449
    %v1451 = vsel %vm793, %v1413, -inf
    %1452 = vmax.xlane.f32.xlu0 %v1451
    %v1453 = vpop.xlane.xlu0 %1452
    %v1454 = vsel %vm793, %v1414, -inf
    %1455 = vmax.xlane.f32.xlu0 %v1454
    %v1456 = vpop.xlane.xlu0 %1455
    %v1457 = vsel %vm793, %v1415, -inf
    %1458 = vmax.xlane.f32.xlu0 %v1457
    %v1459 = vpop.xlane.xlu0 %1458
    %v1460 = vsel %vm793, %v1416, -inf
    %1461 = vmax.xlane.f32.xlu0 %v1460
    %v1462 = vpop.xlane.xlu0 %1461
    %v1463 = vsel %vm793, %v1417, -inf
    %1464 = vmax.xlane.f32.xlu0 %v1463
    %v1465 = vpop.xlane.xlu0 %1464
    %v1466 = vsub.f32 %v1402, %v1420
    %v1467 = vsub.f32 %v1403, %v1423
    %v1468 = vsub.f32 %v1404, %v1426
    %v1469 = vsub.f32 %v1405, %v1429
    %v1470 = vsub.f32 %v1406, %v1432
    %v1471 = vsub.f32 %v1407, %v1435
    %v1472 = vsub.f32 %v1408, %v1438
    %v1473 = vsub.f32 %v1409, %v1441
    %v1474 = vsub.f32 %v1410, %v1444
    %v1475 = vsub.f32 %v1411, %v1447
    %v1476 = vsub.f32 %v1412, %v1450
    %v1477 = vsub.f32 %v1413, %v1453
    %v1478 = vsub.f32 %v1414, %v1456
    %v1479 = vsub.f32 %v1415, %v1459
    %v1480 = vsub.f32 %v1416, %v1462
    %v1481 = vsub.f32 %v1417, %v1465
    %v1482 = vmul.f32 %v1466, 1.442695
    %v1483 = vpow.pop %v1482
    %v1484 = vmul.f32 %v1467, 1.442695
    %v1485 = vpow.pop %v1484
    %v1486 = vmul.f32 %v1468, 1.442695
    %v1487 = vpow.pop %v1486
    %v1488 = vmul.f32 %v1469, 1.442695
    %v1489 = vpow.pop %v1488
    %v1490 = vmul.f32 %v1470, 1.442695
    %v1491 = vpow.pop %v1490
    %v1492 = vmul.f32 %v1471, 1.442695
    %v1493 = vpow.pop %v1492
    %v1494 = vmul.f32 %v1472, 1.442695
    %v1495 = vpow.pop %v1494
    %v1496 = vmul.f32 %v1473, 1.442695
    %v1497 = vpow.pop %v1496
    %v1498 = vmul.f32 %v1474, 1.442695
    %v1499 = vpow.pop %v1498
    %v1500 = vmul.f32 %v1475, 1.442695
    %v1501 = vpow.pop %v1500
    %v1502 = vmul.f32 %v1476, 1.442695
    %v1503 = vpow.pop %v1502
    %v1504 = vmul.f32 %v1477, 1.442695
    %v1505 = vpow.pop %v1504
    %v1506 = vmul.f32 %v1478, 1.442695
    %v1507 = vpow.pop %v1506
    %v1508 = vmul.f32 %v1479, 1.442695
    %v1509 = vpow.pop %v1508
    %v1510 = vmul.f32 %v1480, 1.442695
    %v1511 = vpow.pop %v1510
    %v1512 = vmul.f32 %v1481, 1.442695
    %v1513 = vpow.pop %v1512
    %v1514 = vsel %vm793, %v1483, 0.0
    %1515 = vadd.xlane.f32.xlu0 %v1514
    %v1516 = vpop.xlane.xlu0 %1515
    %v1517 = vsel %vm793, %v1485, 0.0
    %1518 = vadd.xlane.f32.xlu0 %v1517
    %v1519 = vpop.xlane.xlu0 %1518
    %v1520 = vsel %vm793, %v1487, 0.0
    %1521 = vadd.xlane.f32.xlu0 %v1520
    %v1522 = vpop.xlane.xlu0 %1521
    %v1523 = vsel %vm793, %v1489, 0.0
    %1524 = vadd.xlane.f32.xlu0 %v1523
    %v1525 = vpop.xlane.xlu0 %1524
    %v1526 = vsel %vm793, %v1491, 0.0
    %1527 = vadd.xlane.f32.xlu0 %v1526
    %v1528 = vpop.xlane.xlu0 %1527
    %v1529 = vsel %vm793, %v1493, 0.0
    %1530 = vadd.xlane.f32.xlu0 %v1529
    %v1531 = vpop.xlane.xlu0 %1530
    %v1532 = vsel %vm793, %v1495, 0.0
    %1533 = vadd.xlane.f32.xlu0 %v1532
    %v1534 = vpop.xlane.xlu0 %1533
    %v1535 = vsel %vm793, %v1497, 0.0
    %1536 = vadd.xlane.f32.xlu0 %v1535
    %v1537 = vpop.xlane.xlu0 %1536
    %v1538 = vsel %vm793, %v1499, 0.0
    %1539 = vadd.xlane.f32.xlu0 %v1538
    %v1540 = vpop.xlane.xlu0 %1539
    %v1541 = vsel %vm793, %v1501, 0.0
    %1542 = vadd.xlane.f32.xlu0 %v1541
    %v1543 = vpop.xlane.xlu0 %1542
    %v1544 = vsel %vm793, %v1503, 0.0
    %1545 = vadd.xlane.f32.xlu0 %v1544
    %v1546 = vpop.xlane.xlu0 %1545
    %v1547 = vsel %vm793, %v1505, 0.0
    %1548 = vadd.xlane.f32.xlu0 %v1547
    %v1549 = vpop.xlane.xlu0 %1548
    %v1550 = vsel %vm793, %v1507, 0.0
    %1551 = vadd.xlane.f32.xlu0 %v1550
    %v1552 = vpop.xlane.xlu0 %1551
    %v1553 = vsel %vm793, %v1509, 0.0
    %1554 = vadd.xlane.f32.xlu0 %v1553
    %v1555 = vpop.xlane.xlu0 %1554
    %v1556 = vsel %vm793, %v1511, 0.0
    %1557 = vadd.xlane.f32.xlu0 %v1556
    %v1558 = vpop.xlane.xlu0 %1557
    %v1559 = vsel %vm793, %v1513, 0.0
    %1560 = vadd.xlane.f32.xlu0 %v1559
    %v1561 = vpop.xlane.xlu0 %1560
    %v1562 = vrcp.pop %v1516
    %v1563 = vrcp.pop %v1519
    %v1564 = vrcp.pop %v1522
    %v1565 = vrcp.pop %v1525
    %v1566 = vrcp.pop %v1528
    %v1567 = vrcp.pop %v1531
    %v1568 = vrcp.pop %v1534
    %v1569 = vrcp.pop %v1537
    %v1570 = vrcp.pop %v1540
    %v1571 = vrcp.pop %v1543
    %v1572 = vrcp.pop %v1546
    %v1573 = vrcp.pop %v1549
    %v1574 = vrcp.pop %v1552
    %v1575 = vrcp.pop %v1555
    %v1576 = vrcp.pop %v1558
    %v1577 = vrcp.pop %v1561
    %v1578 = vmul.f32 %v1483, %v1562
    %v1579 = vmul.f32 %v1485, %v1563
    %v1580 = vmul.f32 %v1487, %v1564
    %v1581 = vmul.f32 %v1489, %v1565
    %v1582 = vmul.f32 %v1491, %v1566
    %v1583 = vmul.f32 %v1493, %v1567
    %v1584 = vmul.f32 %v1495, %v1568
    %v1585 = vmul.f32 %v1497, %v1569
    %v1586 = vmul.f32 %v1499, %v1570
    %v1587 = vmul.f32 %v1501, %v1571
    %v1588 = vmul.f32 %v1503, %v1572
    %v1589 = vmul.f32 %v1505, %v1573
    %v1590 = vmul.f32 %v1507, %v1574
    %v1591 = vmul.f32 %v1509, %v1575
    %v1592 = vmul.f32 %v1511, %v1576
    %v1593 = vmul.f32 %v1513, %v1577
    %v1594 = vpack.c.bf16 %v1578, %v1578
    %v1595 = vpack.c.bf16 %v1579, %v1579
    %v1596 = vpack.c.bf16 %v1580, %v1580
    %v1597 = vpack.c.bf16 %v1581, %v1581
    %v1598 = vpack.c.bf16 %v1582, %v1582
    %v1599 = vpack.c.bf16 %v1583, %v1583
    %v1600 = vpack.c.bf16 %v1584, %v1584
    %v1601 = vpack.c.bf16 %v1585, %v1585
    %v1602 = vpack.c.bf16 %v1586, %v1586
    %v1603 = vpack.c.bf16 %v1587, %v1587
    %v1604 = vpack.c.bf16 %v1588, %v1588
    %v1605 = vpack.c.bf16 %v1589, %v1589
    %v1606 = vpack.c.bf16 %v1590, %v1590
    %v1607 = vpack.c.bf16 %v1591, %v1591
    %v1608 = vpack.c.bf16 %v1592, %v1592
    %v1609 = vpack.c.bf16 %v1593, %v1593
    %v1612 = vunpack.c.l.b16 %v1594
    %v1613 = vunpack.c.l.b16 %v1595
    %v1614 = vpack.c.b16 %v1613, %v1612
    %1615 = vrot.lane.b32.xlu0 %v995, 96
    %v1616 = vpop.permute.xlu0 %1615
    %v1619 = vsel %vm793, %v1614, 0
    %1621 = vmatpush.bf16.msra.mxu0 0
    %1622 = vmatpush.bf16.msra.mxu0 0
    %1623 = vmatpush.bf16.msra.mxu0 0
    %1624 = vmatpush.bf16.msra.mxu0 0
    %1625 = vmatpush.bf16.msra.mxu0 0
    %1626 = vmatpush.bf16.msra.mxu0 0
    %1627 = vmatpush.bf16.msra.mxu0 0
    %1628 = vmatpush.bf16.msra.mxu0 %v1616
    %1629 = vmatmul.bf16.gmra.mxu0 %v1619
    %v1630 = vpop.f32.mrf.mxu0
    %v1631 = vadd.f32 0.0, %v1630
    %v1632 = vpop.f32.mrf.mxu0
    %v1633 = vadd.f32 0.0, %v1632
    %1634 = vdwg.mxu0
    %v1637 = vunpack.c.l.b16 %v1596
    %v1638 = vunpack.c.l.b16 %v1597
    %v1639 = vpack.c.b16 %v1638, %v1637
    %1640 = vrot.lane.b32.xlu0 %v1023, 96
    %v1641 = vpop.permute.xlu0 %1640
    %v1644 = vsel %vm793, %v1639, 0
    %1646 = vmatpush.bf16.msra.mxu0 0
    %1647 = vmatpush.bf16.msra.mxu0 0
    %1648 = vmatpush.bf16.msra.mxu0 0
    %1649 = vmatpush.bf16.msra.mxu0 0
    %1650 = vmatpush.bf16.msra.mxu0 0
    %1651 = vmatpush.bf16.msra.mxu0 0
    %1652 = vmatpush.bf16.msra.mxu0 0
    %1653 = vmatpush.bf16.msra.mxu0 %v1641
    %1654 = vmatmul.bf16.gmra.mxu0 %v1644
    %v1655 = vpop.f32.mrf.mxu0
    %v1656 = vadd.f32 0.0, %v1655
    %v1657 = vpop.f32.mrf.mxu0
    %v1658 = vadd.f32 0.0, %v1657
    %1659 = vdwg.mxu0
    %v1662 = vunpack.c.l.b16 %v1598
    %v1663 = vunpack.c.l.b16 %v1599
    %v1664 = vpack.c.b16 %v1663, %v1662
    %1665 = vrot.lane.b32.xlu0 %v1051, 96
    %v1666 = vpop.permute.xlu0 %1665
    %v1669 = vsel %vm793, %v1664, 0
    %1671 = vmatpush.bf16.msra.mxu0 0
    %1672 = vmatpush.bf16.msra.mxu0 0
    %1673 = vmatpush.bf16.msra.mxu0 0
    %1674 = vmatpush.bf16.msra.mxu0 0
    %1675 = vmatpush.bf16.msra.mxu0 0
    %1676 = vmatpush.bf16.msra.mxu0 0
    %1677 = vmatpush.bf16.msra.mxu0 0
    %1678 = vmatpush.bf16.msra.mxu0 %v1666
    %1679 = vmatmul.bf16.gmra.mxu0 %v1669
    %v1680 = vpop.f32.mrf.mxu0
    %v1681 = vadd.f32 0.0, %v1680
    %v1682 = vpop.f32.mrf.mxu0
    %v1683 = vadd.f32 0.0, %v1682
    %1684 = vdwg.mxu0
    %v1687 = vunpack.c.l.b16 %v1600
    %v1688 = vunpack.c.l.b16 %v1601
    %v1689 = vpack.c.b16 %v1688, %v1687
    %1690 = vrot.lane.b32.xlu0 %v1079, 96
    %v1691 = vpop.permute.xlu0 %1690
    %v1694 = vsel %vm793, %v1689, 0
    %1696 = vmatpush.bf16.msra.mxu0 0
    %1697 = vmatpush.bf16.msra.mxu0 0
    %1698 = vmatpush.bf16.msra.mxu0 0
    %1699 = vmatpush.bf16.msra.mxu0 0
    %1700 = vmatpush.bf16.msra.mxu0 0
    %1701 = vmatpush.bf16.msra.mxu0 0
    %1702 = vmatpush.bf16.msra.mxu0 0
    %1703 = vmatpush.bf16.msra.mxu0 %v1691
    %1704 = vmatmul.bf16.gmra.mxu0 %v1694
    %v1705 = vpop.f32.mrf.mxu0
    %v1706 = vadd.f32 0.0, %v1705
    %v1707 = vpop.f32.mrf.mxu0
    %v1708 = vadd.f32 0.0, %v1707
    %1709 = vdwg.mxu0
    %v1712 = vunpack.c.l.b16 %v1602
    %v1713 = vunpack.c.l.b16 %v1603
    %v1714 = vpack.c.b16 %v1713, %v1712
    %1715 = vrot.lane.b32.xlu0 %v1107, 96
    %v1716 = vpop.permute.xlu0 %1715
    %v1719 = vsel %vm793, %v1714, 0
    %1721 = vmatpush.bf16.msra.mxu0 0
    %1722 = vmatpush.bf16.msra.mxu0 0
    %1723 = vmatpush.bf16.msra.mxu0 0
    %1724 = vmatpush.bf16.msra.mxu0 0
    %1725 = vmatpush.bf16.msra.mxu0 0
    %1726 = vmatpush.bf16.msra.mxu0 0
    %1727 = vmatpush.bf16.msra.mxu0 0
    %1728 = vmatpush.bf16.msra.mxu0 %v1716
    %1729 = vmatmul.bf16.gmra.mxu0 %v1719
    %v1730 = vpop.f32.mrf.mxu0
    %v1731 = vadd.f32 0.0, %v1730
    %v1732 = vpop.f32.mrf.mxu0
    %v1733 = vadd.f32 0.0, %v1732
    %1734 = vdwg.mxu0
    %v1737 = vunpack.c.l.b16 %v1604
    %v1738 = vunpack.c.l.b16 %v1605
    %v1739 = vpack.c.b16 %v1738, %v1737
    %1740 = vrot.lane.b32.xlu0 %v1135, 96
    %v1741 = vpop.permute.xlu0 %1740
    %v1744 = vsel %vm793, %v1739, 0
    %1746 = vmatpush.bf16.msra.mxu0 0
    %1747 = vmatpush.bf16.msra.mxu0 0
    %1748 = vmatpush.bf16.msra.mxu0 0
    %1749 = vmatpush.bf16.msra.mxu0 0
    %1750 = vmatpush.bf16.msra.mxu0 0
    %1751 = vmatpush.bf16.msra.mxu0 0
    %1752 = vmatpush.bf16.msra.mxu0 0
    %1753 = vmatpush.bf16.msra.mxu0 %v1741
    %1754 = vmatmul.bf16.gmra.mxu0 %v1744
    %v1755 = vpop.f32.mrf.mxu0
    %v1756 = vadd.f32 0.0, %v1755
    %v1757 = vpop.f32.mrf.mxu0
    %v1758 = vadd.f32 0.0, %v1757
    %1759 = vdwg.mxu0
    %v1762 = vunpack.c.l.b16 %v1606
    %v1763 = vunpack.c.l.b16 %v1607
    %v1764 = vpack.c.b16 %v1763, %v1762
    %1765 = vrot.lane.b32.xlu0 %v1163, 96
    %v1766 = vpop.permute.xlu0 %1765
    %v1769 = vsel %vm793, %v1764, 0
    %1771 = vmatpush.bf16.msra.mxu0 0
    %1772 = vmatpush.bf16.msra.mxu0 0
    %1773 = vmatpush.bf16.msra.mxu0 0
    %1774 = vmatpush.bf16.msra.mxu0 0
    %1775 = vmatpush.bf16.msra.mxu0 0
    %1776 = vmatpush.bf16.msra.mxu0 0
    %1777 = vmatpush.bf16.msra.mxu0 0
    %1778 = vmatpush.bf16.msra.mxu0 %v1766
    %1779 = vmatmul.bf16.gmra.mxu0 %v1769
    %v1780 = vpop.f32.mrf.mxu0
    %v1781 = vadd.f32 0.0, %v1780
    %v1782 = vpop.f32.mrf.mxu0
    %v1783 = vadd.f32 0.0, %v1782
    %1784 = vdwg.mxu0
    %v1787 = vunpack.c.l.b16 %v1608
    %v1788 = vunpack.c.l.b16 %v1609
    %v1789 = vpack.c.b16 %v1788, %v1787
    %1790 = vrot.lane.b32.xlu0 %v1191, 96
    %v1791 = vpop.permute.xlu0 %1790
    %v1794 = vsel %vm793, %v1789, 0
    %1796 = vmatpush.bf16.msra.mxu0 0
    %1797 = vmatpush.bf16.msra.mxu0 0
    %1798 = vmatpush.bf16.msra.mxu0 0
    %1799 = vmatpush.bf16.msra.mxu0 0
    %1800 = vmatpush.bf16.msra.mxu0 0
    %1801 = vmatpush.bf16.msra.mxu0 0
    %1802 = vmatpush.bf16.msra.mxu0 0
    %1803 = vmatpush.bf16.msra.mxu0 %v1791
    %1804 = vmatmul.bf16.gmra.mxu0 %v1794
    %v1805 = vpop.f32.mrf.mxu0
    %v1806 = vadd.f32 0.0, %v1805
    %v1807 = vpop.f32.mrf.mxu0
    %v1808 = vadd.f32 0.0, %v1807
    %1809 = vdwg.mxu0
    %1826 = vrot.lane.b32.xlu0 %v1631, 32
    %v1827 = vpop.permute.xlu0 %1826
    %1828 = vrot.lane.b32.xlu0 %v1633, 32
    %v1829 = vpop.permute.xlu0 %1828
    %1830 = vrot.lane.b32.xlu0 %v1656, 32
    %v1831 = vpop.permute.xlu0 %1830
    %1832 = vrot.lane.b32.xlu0 %v1658, 32
    %v1833 = vpop.permute.xlu0 %1832
    %1834 = vrot.lane.b32.xlu0 %v1681, 32
    %v1835 = vpop.permute.xlu0 %1834
    %1836 = vrot.lane.b32.xlu0 %v1683, 32
    %v1837 = vpop.permute.xlu0 %1836
    %1838 = vrot.lane.b32.xlu0 %v1706, 32
    %v1839 = vpop.permute.xlu0 %1838
    %1840 = vrot.lane.b32.xlu0 %v1708, 32
    %v1841 = vpop.permute.xlu0 %1840
    %1842 = vrot.lane.b32.xlu0 %v1731, 32
    %v1843 = vpop.permute.xlu0 %1842
    %1844 = vrot.lane.b32.xlu0 %v1733, 32
    %v1845 = vpop.permute.xlu0 %1844
    %1846 = vrot.lane.b32.xlu0 %v1756, 32
    %v1847 = vpop.permute.xlu0 %1846
    %1848 = vrot.lane.b32.xlu0 %v1758, 32
    %v1849 = vpop.permute.xlu0 %1848
    %1850 = vrot.lane.b32.xlu0 %v1781, 32
    %v1851 = vpop.permute.xlu0 %1850
    %1852 = vrot.lane.b32.xlu0 %v1783, 32
    %v1853 = vpop.permute.xlu0 %1852
    %1854 = vrot.lane.b32.xlu0 %v1806, 32
    %v1855 = vpop.permute.xlu0 %1854
    %1856 = vrot.lane.b32.xlu0 %v1808, 32
    %v1857 = vpop.permute.xlu0 %1856
    %v1874 = vsel %vm567, %v1010, %v1827
    %v1875 = vsel %vm567, %v1012, %v1829
    %v1876 = vsel %vm567, %v1038, %v1831
    %v1877 = vsel %vm567, %v1040, %v1833
    %v1878 = vsel %vm567, %v1066, %v1835
    %v1879 = vsel %vm567, %v1068, %v1837
    %v1880 = vsel %vm567, %v1094, %v1839
    %v1881 = vsel %vm567, %v1096, %v1841
    %v1882 = vsel %vm567, %v1122, %v1843
    %v1883 = vsel %vm567, %v1124, %v1845
    %v1884 = vsel %vm567, %v1150, %v1847
    %v1885 = vsel %vm567, %v1152, %v1849
    %v1886 = vsel %vm567, %v1178, %v1851
    %v1887 = vsel %vm567, %v1180, %v1853
    %v1888 = vsel %vm567, %v1206, %v1855
    %v1889 = vsel %vm567, %v1208, %v1857
    %v1890 = vpack.c.bf16 %v1874, %v1874
    %v1891 = vpack.c.bf16 %v1875, %v1875
    %v1892 = vpack.c.bf16 %v1876, %v1876
    %v1893 = vpack.c.bf16 %v1877, %v1877
    %v1894 = vpack.c.bf16 %v1878, %v1878
    %v1895 = vpack.c.bf16 %v1879, %v1879
    %v1896 = vpack.c.bf16 %v1880, %v1880
    %v1897 = vpack.c.bf16 %v1881, %v1881
    %v1898 = vpack.c.bf16 %v1882, %v1882
    %v1899 = vpack.c.bf16 %v1883, %v1883
    %v1900 = vpack.c.bf16 %v1884, %v1884
    %v1901 = vpack.c.bf16 %v1885, %v1885
    %v1902 = vpack.c.bf16 %v1886, %v1886
    %v1903 = vpack.c.bf16 %v1887, %v1887
    %v1904 = vpack.c.bf16 %v1888, %v1888
    %v1905 = vpack.c.bf16 %v1889, %v1889
    %v1906 = vld [vmem:[#allocation11] sm:$0xf]
    %v1907 = vld [vmem:[#allocation11 + $0x4] sm:$0xf]
    %v1908 = vld [vmem:[#allocation11 + $0x8] sm:$0xf]
    %v1909 = vld [vmem:[#allocation11 + $0xc] sm:$0xf]
    %v1910 = vld [vmem:[#allocation11 + $0x10] sm:$0xf]
    %v1911 = vld [vmem:[#allocation11 + $0x14] sm:$0xf]
    %v1912 = vld [vmem:[#allocation11 + $0x18] sm:$0xf]
    %v1913 = vld [vmem:[#allocation11 + $0x1c] sm:$0xf]
    %v1914 = vld [vmem:[%s8] sm:$0x1]
    %v1916 = vperm.slane %v1914, 0
    %v1934 = vunpack.c.l.b16 %v1890
    %v1935 = vunpack.c.l.b16 %v1891
    %v1936 = vunpack.c.l.b16 %v1892
    %v1937 = vunpack.c.l.b16 %v1893
    %v1938 = vunpack.c.l.b16 %v1894
    %v1939 = vunpack.c.l.b16 %v1895
    %v1940 = vunpack.c.l.b16 %v1896
    %v1941 = vunpack.c.l.b16 %v1897
    %v1942 = vunpack.c.l.b16 %v1898
    %v1943 = vunpack.c.l.b16 %v1899
    %v1944 = vunpack.c.l.b16 %v1900
    %v1945 = vunpack.c.l.b16 %v1901
    %v1946 = vunpack.c.l.b16 %v1902
    %v1947 = vunpack.c.l.b16 %v1903
    %v1948 = vunpack.c.l.b16 %v1904
    %v1949 = vunpack.c.l.b16 %v1905
    %v1950 = vpack.c.b16 %v1935, %v1934
    %v1951 = vpack.c.b16 %v1937, %v1936
    %v1952 = vpack.c.b16 %v1939, %v1938
    %v1953 = vpack.c.b16 %v1941, %v1940
    %v1954 = vpack.c.b16 %v1943, %v1942
    %v1955 = vpack.c.b16 %v1945, %v1944
    %v1956 = vpack.c.b16 %v1947, %v1946
    %v1957 = vpack.c.b16 %v1949, %v1948
    %v1966 = vunpack.c.l.b16 %v1906
    %v1967 = vunpack.c.l.b16 %v1907
    %v1968 = vunpack.c.l.b16 %v1908
    %v1969 = vunpack.c.l.b16 %v1909
    %v1970 = vunpack.c.l.b16 %v1910
    %v1971 = vunpack.c.l.b16 %v1911
    %v1972 = vunpack.c.l.b16 %v1912
    %v1973 = vunpack.c.l.b16 %v1913
    %v1974 = vpack.c.b16 %v1967, %v1966
    %v1975 = vpack.c.b16 %v1969, %v1968
    %v1976 = vpack.c.b16 %v1971, %v1970
    %v1977 = vpack.c.b16 %v1973, %v1972
    %v1983 = vsel %vm454, %v1950, 0
    %v1986 = vsel %vm454, %v1951, 0
    %v1989 = vsel %vm454, %v1952, 0
    %v1992 = vsel %vm454, %v1953, 0
    %v1995 = vsel %vm454, %v1954, 0
    %v1998 = vsel %vm454, %v1955, 0
    %v2001 = vsel %vm454, %v1956, 0
    %v2004 = vsel %vm454, %v1957, 0
    %2006 = vmatpush.bf16.msra.mxu0 0
    %2007 = vmatpush.bf16.msra.mxu0 0
    %2008 = vmatpush.bf16.msra.mxu0 0
    %2009 = vmatpush.bf16.msra.mxu0 0
    %2010 = vmatpush.bf16.msra.mxu0 %v1977
    %2011 = vmatpush.bf16.msra.mxu0 %v1976
    %2012 = vmatpush.bf16.msra.mxu0 %v1975
    %2013 = vmatpush.bf16.msra.mxu0 %v1974
    %2014 = vmatmul.bf16.gmra.mxu0 %v1983
    %v2015 = vpop.f32.mrf.mxu0
    %v2016 = vadd.f32 %v1916, %v2015
    %v2017 = vpop.f32.mrf.mxu0
    %v2018 = vadd.f32 %v1916, %v2017
    %2019 = vmatmul.bf16.gmra.mxu0 %v1986
    %v2020 = vpop.f32.mrf.mxu0
    %v2021 = vadd.f32 %v1916, %v2020
    %v2022 = vpop.f32.mrf.mxu0
    %v2023 = vadd.f32 %v1916, %v2022
    %2024 = vmatmul.bf16.gmra.mxu0 %v1989
    %v2025 = vpop.f32.mrf.mxu0
    %v2026 = vadd.f32 %v1916, %v2025
    %v2027 = vpop.f32.mrf.mxu0
    %v2028 = vadd.f32 %v1916, %v2027
    %2029 = vmatmul.bf16.gmra.mxu0 %v1992
    %v2030 = vpop.f32.mrf.mxu0
    %v2031 = vadd.f32 %v1916, %v2030
    %v2032 = vpop.f32.mrf.mxu0
    %v2033 = vadd.f32 %v1916, %v2032
    %2034 = vmatmul.bf16.gmra.mxu0 %v1995
    %v2035 = vpop.f32.mrf.mxu0
    %v2036 = vadd.f32 %v1916, %v2035
    %v2037 = vpop.f32.mrf.mxu0
    %v2038 = vadd.f32 %v1916, %v2037
    %2039 = vmatmul.bf16.gmra.mxu0 %v1998
    %v2040 = vpop.f32.mrf.mxu0
    %v2041 = vadd.f32 %v1916, %v2040
    %v2042 = vpop.f32.mrf.mxu0
    %v2043 = vadd.f32 %v1916, %v2042
    %2044 = vmatmul.bf16.gmra.mxu0 %v2001
    %v2045 = vpop.f32.mrf.mxu0
    %v2046 = vadd.f32 %v1916, %v2045
    %v2047 = vpop.f32.mrf.mxu0
    %v2048 = vadd.f32 %v1916, %v2047
    %2049 = vmatmul.bf16.gmra.mxu0 %v2004
    %v2050 = vpop.f32.mrf.mxu0
    %v2051 = vadd.f32 %v1916, %v2050
    %v2052 = vpop.f32.mrf.mxu0
    %v2053 = vadd.f32 %v1916, %v2052
    %2054 = vdwg.mxu0
    %2055 = vst.msk [vmem:[#allocation13] sm:$0xff] %vm454, %v2016
    %2056 = vst.msk [vmem:[#allocation13 + $0x8] sm:$0xff] %vm454, %v2018
    %2057 = vst.msk [vmem:[#allocation13 + $0x10] sm:$0xff] %vm454, %v2021
    %2058 = vst.msk [vmem:[#allocation13 + $0x18] sm:$0xff] %vm454, %v2023
    %2059 = vst.msk [vmem:[#allocation13 + $0x20] sm:$0xff] %vm454, %v2026
    %2060 = vst.msk [vmem:[#allocation13 + $0x28] sm:$0xff] %vm454, %v2028
    %2061 = vst.msk [vmem:[#allocation13 + $0x30] sm:$0xff] %vm454, %v2031
    %2062 = vst.msk [vmem:[#allocation13 + $0x38] sm:$0xff] %vm454, %v2033
    %2063 = vst.msk [vmem:[#allocation13 + $0x40] sm:$0xff] %vm454, %v2036
    %2064 = vst.msk [vmem:[#allocation13 + $0x48] sm:$0xff] %vm454, %v2038
    %2065 = vst.msk [vmem:[#allocation13 + $0x50] sm:$0xff] %vm454, %v2041
    %2066 = vst.msk [vmem:[#allocation13 + $0x58] sm:$0xff] %vm454, %v2043
    %2067 = vst.msk [vmem:[#allocation13 + $0x60] sm:$0xff] %vm454, %v2046
    %2068 = vst.msk [vmem:[#allocation13 + $0x68] sm:$0xff] %vm454, %v2048
    %2069 = vst.msk [vmem:[#allocation13 + $0x70] sm:$0xff] %vm454, %v2051
    %2070 = vst.msk [vmem:[#allocation13 + $0x78] sm:$0xff] %vm454, %v2053
    // Predicated region
    $region62: #{tpu_custom_call.1} parent=1 // pred_check
      _
    $region63: #{tpu_custom_call.1} parent=1 // pred_check_branch
      %2072 = sbr.rel (0) target = $region65
    $region64: #{tpu_custom_call.1} parent=1 // pred_region
      %2074 = vsyncadd [#allocation4], 0
      %s2075 = sshll.u32 [#allocation13], 4
      %s2076 = int_to_ptr.vmem [resolvable:$true] %s2075
      %s2077 = sshll.u32 %s9, 4
      %s2078 = int_to_ptr.hbm [resolvable:$true] %s2077
      %2083 = dma.vmem_to_hbm [thread:$0]  %s2076, 2048, %s2078, [#allocation4], 128, 128, 8
    $region65: #{tpu_custom_call.1} parent=1 // pred_fallthru
      _
    // Predicated region
    $region66: #{tpu_custom_call.1} parent=1 // pred_check
      _
    $region67: #{tpu_custom_call.1} parent=1 // pred_check_branch
      %2085 = sbr.rel (0) target = $region69
    $region68: #{tpu_custom_call.1} parent=1 // pred_region
      %2087 = dma.done [#allocation4], 2048
    $region69: #{tpu_custom_call.1} parent=1 // pred_fallthru
      _
    %2088 = vsyncpa [#allocation3], 1
    %2089 = vsyncpa [#allocation6], 1
    %2090 = vsyncpa [#allocation9], 1
    %2091 = vsyncpa [#allocation12], 1
    %2092 = vsyncpa [#allocation4], 1

</llo_original>
